<compile_context>
chip_gen: v5e
topology: v5e:2x2
jax: 0.10.0
libtpu: 0.0.40
codegen_flags: <defaults>
</compile_context>

<pallas_src>
import jax
import jax.numpy as jnp
from jax.experimental import pallas as pl
from jax.experimental.pallas import tpu as pltpu


def _round_up(x, m):
    return (x + m - 1) // m * m


def _lane_align_for_device():
    """Hidden-dim padding target: 256 on v6e/v7x (256-wide MXU), 128 otherwise."""
    try:
        kind = jax.devices()[0].device_kind.lower()
    except Exception:
        return 128
    for old in ("v2", "v3", "v4", "v5"):
        if old in kind:
            return 128
    return 256


# ----------------------------------------------------------------------------
# Kernels
# ----------------------------------------------------------------------------
def _attn_kernel_c1(x_ref, w1_ref, b1_ref, w2_ref, b2_ref, a_ref):
    """n_classes == 1: MXU for x@w1; second linear (1 useful column) done as a
    VPU multiply + XLU lane reduce; lane-dense (1, tile_n) row store."""
    h = jnp.dot(x_ref[...], w1_ref[...], preferred_element_type=jnp.float32)
    h = jnp.tanh(h + b1_ref[...])                                 # VPU + EUP
    s = jnp.sum(h * w2_ref[...], axis=-1)                         # [T]
    a_ref[...] = (s + b2_ref[0]).astype(a_ref.dtype).reshape(1, -1)


def _attn_kernel_general(x_ref, w1_ref, b1_ref, w2_ref, b2_ref, a_ref):
    """General n_classes: both linears on the MXU; C padded to a full lane tile
    so the output store is unmasked."""
    h = jnp.dot(x_ref[...], w1_ref[...], preferred_element_type=jnp.float32)
    h = jnp.tanh(h + b1_ref[...])
    a = jnp.dot(h, w2_ref[...], preferred_element_type=jnp.float32) + b2_ref[...]
    a_ref[...] = a.astype(a_ref.dtype)


# ----------------------------------------------------------------------------
# Wrapper
# ----------------------------------------------------------------------------
def attn_net_forward(x, w1, b1, w2, b2, *, tile_n=512, use_bf16=False,
                     core_parallel=False):
    """Pallas implementation of Attn_Net.forward.

    Args:
      x:  [N, L]
      w1: [L, D]   (torch Linear(L, D).weight.T)
      b1: [1, D]
      w2: [D, C]   (torch Linear(D, n_classes).weight.T)
      b2: [1, C]
      tile_n: rows of x per grid step (rounded to a multiple of 128). VMEM
        working set ~= 2*tile_n*L*itemsize (x double buffer) + w1/b1/w2 +
        tile_n*D_pad*4 (f32 intermediate) + 2*tile_n*C_pad*itemsize (output);
        a budget loop caps tile_n so this fits v7x's 64 MiB VMEM.
      use_bf16: cast x and w1 to bf16 in the wrapper (f32 accumulation in the
        kernel). Recommended on all generations for HBM-bound shapes; results
        are bf16-rounded, so don't expect f32-level tolerances.
      core_parallel: on v7x (2 TensorCores/chip), use CORE_PARALLEL so the N
        loop is split across the cores. No-op/leave False on v5e/v6e.

    Returns:
      (A, x) with A of shape [N, C], mirroring the PyTorch module.
    """
    N, L = x.shape
    D = w1.shape[1]
    C = w2.shape[1]
    orig_x = x
    out_dtype = x.dtype

    # Cast the streamed operands here (not in-kernel) so the DMA moves bf16.
    if use_bf16:
        x = x.astype(jnp.bfloat16)
        w1 = w1.astype(jnp.bfloat16)
    b1 = b1.astype(jnp.float32)
    w2 = w2.astype(jnp.float32)
    b2 = b2.astype(jnp.float32)

    # Pad hidden dim to the MXU lane width (exact: padded units see zero weight
    # and bias -> tanh(0)=0 -> zero contribution). Weights are tiny; under jit
    # with constant weights this padding is constant-folded once.
    align = _lane_align_for_device()
    D_pad = _round_up(D, align)
    if D_pad != D:
        w1 = jnp.pad(w1, ((0, 0), (0, D_pad - D)))
        b1 = jnp.pad(b1, ((0, 0), (0, D_pad - D)))
        w2 = jnp.pad(w2, ((0, D_pad - D), (0, 0)))

    # N is NOT padded: the last grid step handles a ragged tile.
    tile_n = _round_up(max(128, min(tile_n, _round_up(N, 128))), 128)

    x_isz = x.dtype.itemsize
    w_isz = w1.dtype.itemsize
    o_isz = jnp.dtype(out_dtype).itemsize
    C_pad = 1 if C == 1 else _round_up(C, 128)

    def vmem_estimate(t):
        return (2 * t * L * x_isz                         # x double buffer
                + 2 * (L * D_pad + D_pad) * w_isz         # w1 + b1
                + 2 * (D_pad * C_pad + C_pad) * 4         # w2 + b2
                + 2 * t * C_pad * o_isz                   # output double buffer
                + 4 * t * D_pad)                          # f32 intermediate h

    # Conservative working-set budget that fits v7x's 64 MiB VMEM with headroom.
    while tile_n > 128 and vmem_estimate(tile_n) > (20 << 20):
        tile_n -= 128
    vmem_limit = int(min(max(2 * vmem_estimate(tile_n), 16 << 20), 48 << 20))

    num_tiles = pl.cdiv(N, tile_n)

    cost = pl.CostEstimate(
        flops=2 * N * D_pad * (L + C_pad),
        transcendentals=N * D_pad,
        bytes_accessed=(N * L * x_isz + L * D_pad * w_isz + D_pad * 4
                        + D_pad * C_pad * 4 + C_pad * 4 + N * C_pad * o_isz),
    )

    semantics = (pltpu.CORE_PARALLEL,) if core_parallel else ("parallel",)
    cparams = pltpu.CompilerParams(dimension_semantics=semantics,
                                   vmem_limit_bytes=vmem_limit)

    def _wspec(shape, single_buffered):
        idx = lambda i, _s=shape: (0,) * len(_s)
        if single_buffered:
            # Constant index map -> one VMEM buffer is enough (halves weight VMEM).
            return pl.BlockSpec(shape, idx, pipeline_mode=pl.Buffered(1))
        return pl.BlockSpec(shape, idx)

    if C == 1:
        w2_row = w2.reshape(1, D_pad)          # [1, D_pad] for VPU broadcast
        b2_s = b2.reshape(1)                   # scalar -> SMEM

        def run(single_buffered):
            return pl.pallas_call(
                _attn_kernel_c1,
                out_shape=jax.ShapeDtypeStruct((1, N), out_dtype),
                grid=(num_tiles,),
                in_specs=[
                    pl.BlockSpec((tile_n, L), lambda i: (i, 0)),     # x (pipelined)
                    _wspec((L, D_pad), single_buffered),             # w1 resident
                    _wspec((1, D_pad), single_buffered),             # b1 resident
                    _wspec((1, D_pad), single_buffered),             # w2 row resident
                    pl.BlockSpec(memory_space=pltpu.MemorySpace.SMEM),  # b2 scalar
                ],
                out_specs=pl.BlockSpec((1, tile_n), lambda i: (0, i)),  # lane-dense
                compiler_params=cparams,
                cost_estimate=cost,
            )(x, w1, b1, w2_row, b2_s)

        try:
            out = run(True)
        except Exception:       # pipeline_mode / Buffered(1) unsupported: fall back
            out = run(False)
        a = out.reshape(N, 1)
    else:
        if C_pad != C:
            w2 = jnp.pad(w2, ((0, 0), (0, C_pad - C)))
            b2 = jnp.pad(b2, ((0, 0), (0, C_pad - C)))

        def run(single_buffered):
            return pl.pallas_call(
                _attn_kernel_general,
                out_shape=jax.ShapeDtypeStruct((N, C_pad), out_dtype),
                grid=(num_tiles,),
                in_specs=[
                    pl.BlockSpec((tile_n, L), lambda i: (i, 0)),
                    _wspec((L, D_pad), single_buffered),
                    _wspec((1, D_pad), single_buffered),
                    _wspec((D_pad, C_pad), single_buffered),
                    _wspec((1, C_pad), single_buffered),
                ],
                out_specs=pl.BlockSpec((tile_n, C_pad), lambda i: (i, 0)),
                compiler_params=cparams,
                cost_estimate=cost,
            )(x, w1, b1, w2, b2)

        try:
            out = run(True)
        except Exception:
            out = run(False)
        a = out[:, :C]

    # The module returns (attention_logits, original_x); x is a pass-through.
    return a, orig_x


def init_params(key, L, D, n_classes, dtype=jnp.float32):
    """Deterministic synthetic parameter init (torch-Linear-like scale)."""
    k1, k2, k3, k4 = jax.random.split(key, 4)
    s1 = 1.0 / jnp.sqrt(L)
    s2 = 1.0 / jnp.sqrt(D)
    w1 = jax.random.uniform(k1, (L, D), dtype, minval=-s1, maxval=s1)
    b1 = jax.random.uniform(k2, (1, D), dtype, minval=-s1, maxval=s1)
    w2 = jax.random.uniform(k3, (D, n_classes), dtype, minval=-s2, maxval=s2)
    b2 = jax.random.uniform(k4, (1, n_classes), dtype, minval=-s2, maxval=s2)
    return w1, b1, w2, b2


if __name__ == "__main__":
    key = jax.random.PRNGKey(0)
    k1, k2, k3, k4 = jax.random.split(key, 4)
    HI = jax.lax.Precision.HIGHEST

    # --- Test 1: n_classes == 1 fast path, ragged multi-tile grid (300 % 128) ---
    N, L, D, C = 300, 256, 128, 1
    x = jax.random.normal(k1, (N, L), jnp.float32)
    w1, b1, w2, b2 = init_params(k2, L, D, C)

    a, x_out = attn_net_forward(x, w1, b1, w2, b2, tile_n=128)
    jax.block_until_ready((a, x_out))

    ref_h = jnp.tanh(jnp.dot(x, w1, precision=HI) + b1)
    ref = jnp.dot(ref_h, w2, precision=HI) + b2
    assert a.shape == (N, C)
    assert x_out.shape == (N, L)
    assert jnp.allclose(a, ref, atol=2e-3, rtol=2e-3), float(jnp.max(jnp.abs(a - ref)))
    assert jnp.array_equal(x_out, x)

    # --- Test 2: bf16-fed path (wrapper-side cast, f32 accumulation) ---
    a_bf, _ = attn_net_forward(x, w1, b1, w2, b2, tile_n=256, use_bf16=True)
    jax.block_until_ready(a_bf)
    xb = x.astype(jnp.bfloat16)
    w1b = w1.astype(jnp.bfloat16)
    ref_bh = jnp.tanh(jnp.dot(xb, w1b, precision=HI,
                              preferred_element_type=jnp.float32) + b1)
    ref_b = jnp.dot(ref_bh, w2, precision=HI) + b2
    assert a_bf.shape == (N, C)
    assert jnp.allclose(a_bf, ref_b, atol=5e-3, rtol=5e-3), \
        float(jnp.max(jnp.abs(a_bf - ref_b)))

    # --- Test 3: general n_classes > 1 path (C padded to a full lane tile) ---
    N2, L2, D2, C2 = 70, 64, 32, 3
    x2 = jax.random.normal(k3, (N2, L2), jnp.float32)
    w1c, b1c, w2c, b2c = init_params(k4, L2, D2, C2)
    a2, x2_out = attn_net_forward(x2, w1c, b1c, w2c, b2c, tile_n=128)
    jax.block_until_ready((a2, x2_out))
    ref2_h = jnp.tanh(jnp.dot(x2, w1c, precision=HI) + b1c)
    ref2 = jnp.dot(ref2_h, w2c, precision=HI) + b2c
    assert a2.shape == (N2, C2)
    assert jnp.allclose(a2, ref2, atol=2e-3, rtol=2e-3), \
        float(jnp.max(jnp.abs(a2 - ref2)))
    assert jnp.array_equal(x2_out, x2)

    print("KERNEL_OK")
</pallas_src>

<mosaic_0001>
module attributes {stable_mosaic.version = 11 : i64} {
  func.func @_attn_kernel_c1(%arg0: i32, %arg1: memref<128x256xf32, #tpu.memory_space<vmem>>, %arg2: memref<256x256xf32, #tpu.memory_space<vmem>>, %arg3: memref<1x256xf32, #tpu.memory_space<vmem>>, %arg4: memref<1x256xf32, #tpu.memory_space<vmem>>, %arg5: memref<1xf32, #tpu.memory_space<smem>>, %arg6: memref<1x128xf32, #tpu.memory_space<vmem>>) attributes {dimension_semantics = [#tpu.dimension_semantics<parallel>], iteration_bounds = array<i64: 3>, scalar_prefetch = 0 : i64, scratch_operands = 0 : i64, tpu.core_type = #tpu.core_type<tc>, window_params = [{transform_indices = @transform_0, window_bounds = array<i64: 128, 256>}, {pipeline_mode = #tpu.pipeline_mode<synchronous>, transform_indices = @transform_1, window_bounds = array<i64: 256, 256>}, {pipeline_mode = #tpu.pipeline_mode<synchronous>, transform_indices = @transform_2, window_bounds = array<i64: 1, 256>}, {pipeline_mode = #tpu.pipeline_mode<synchronous>, transform_indices = @transform_3, window_bounds = array<i64: 1, 256>}, {transform_indices = @transform_4, window_bounds = array<i64: 1>}, {transform_indices = @transform_5, window_bounds = array<i64: 1, 128>}]} {
    %c0 = arith.constant 0 : index
    %c0_0 = arith.constant 0 : index
    %0 = vector.load %arg1[%c0, %c0_0] : memref<128x256xf32, #tpu.memory_space<vmem>>, vector<128x256xf32>
    %c0_1 = arith.constant 0 : index
    %c0_2 = arith.constant 0 : index
    %1 = vector.load %arg2[%c0_1, %c0_2] : memref<256x256xf32, #tpu.memory_space<vmem>>, vector<256x256xf32>
    %cst = arith.constant dense<0.000000e+00> : vector<128x256xf32>
    %2 = tpu.matmul %0, %1, %cst {dimension_numbers = #tpu.dot_dimension_numbers<[1], [0], [0], [1], [0, 0, 1, 1], [], []>} : vector<128x256xf32>, vector<256x256xf32>, vector<128x256xf32> -> vector<128x256xf32>
    %c0_3 = arith.constant 0 : index
    %c0_4 = arith.constant 0 : index
    %3 = vector.load %arg3[%c0_3, %c0_4] : memref<1x256xf32, #tpu.memory_space<vmem>>, vector<1x256xf32>
    %4 = vector.broadcast %3 : vector<1x256xf32> to vector<128x256xf32>
    %5 = arith.addf %2, %4 : vector<128x256xf32>
    %6 = math.tanh %5 : vector<128x256xf32>
    %c0_5 = arith.constant 0 : index
    %c0_6 = arith.constant 0 : index
    %7 = vector.load %arg4[%c0_5, %c0_6] : memref<1x256xf32, #tpu.memory_space<vmem>>, vector<1x256xf32>
    %8 = vector.broadcast %7 : vector<1x256xf32> to vector<128x256xf32>
    %9 = arith.mulf %6, %8 : vector<128x256xf32>
    %cst_7 = arith.constant dense<0.000000e+00> : vector<128xf32>
    %10 = vector.multi_reduction <add>, %9, %cst_7 [1] : vector<128x256xf32> to vector<128xf32>
    %c0_8 = arith.constant 0 : index
    %11 = memref.load %arg5[%c0_8] : memref<1xf32, #tpu.memory_space<smem>>
    %12 = vector.broadcast %11 : f32 to vector<128xf32>
    %13 = arith.addf %10, %12 : vector<128xf32>
    %14 = vector.shape_cast %13 : vector<128xf32> to vector<1x128xf32>
    %c0_9 = arith.constant 0 : index
    %c0_10 = arith.constant 0 : index
    %15 = vector.load %arg6[%c0_9, %c0_10] : memref<1x128xf32, #tpu.memory_space<vmem>>, vector<1x128xf32>
    tpu.vector_store %arg6[%c0_9, %c0_10], %14 {strides = array<i32>} : memref<1x128xf32, #tpu.memory_space<vmem>>, vector<1x128xf32>,
    return
  }
  func.func @transform_0(%arg0: i32) -> (i32, i32) {
    %c0_i32 = arith.constant 0 : i32
    %c0_i32_0 = arith.constant 0 : i32
    return %arg0, %c0_i32 : i32, i32
  }
  func.func @transform_1(%arg0: i32) -> (i32, i32) {
    %c0_i32 = arith.constant 0 : i32
    %c0_i32_0 = arith.constant 0 : i32
    %c0_i32_1 = arith.constant 0 : i32
    return %c0_i32, %c0_i32_0 : i32, i32
  }
  func.func @transform_2(%arg0: i32) -> (i32, i32) {
    %c0_i32 = arith.constant 0 : i32
    %c0_i32_0 = arith.constant 0 : i32
    %c0_i32_1 = arith.constant 0 : i32
    return %c0_i32, %c0_i32_0 : i32, i32
  }
  func.func @transform_3(%arg0: i32) -> (i32, i32) {
    %c0_i32 = arith.constant 0 : i32
    %c0_i32_0 = arith.constant 0 : i32
    %c0_i32_1 = arith.constant 0 : i32
    return %c0_i32, %c0_i32_0 : i32, i32
  }
  func.func @transform_4(%arg0: i32) -> i32 {
    %c0_i32 = arith.constant 0 : i32
    %c0_i32_0 = arith.constant 0 : i32
    return %c0_i32 : i32
  }
  func.func @transform_5(%arg0: i32) -> (i32, i32) {
    %c0_i32 = arith.constant 0 : i32
    %c0_i32_0 = arith.constant 0 : i32
    return %c0_i32, %arg0 : i32, i32
  }
}

module attributes {stable_mosaic.version = 11 : i64} {
  func.func @_attn_kernel_c1(%arg0: i32, %arg1: memref<128x256xf32, #tpu.memory_space<vmem>>, %arg2: memref<256x256xf32, #tpu.memory_space<vmem>>, %arg3: memref<1x256xf32, #tpu.memory_space<vmem>>, %arg4: memref<1x256xf32, #tpu.memory_space<vmem>>, %arg5: memref<1xf32, #tpu.memory_space<smem>>, %arg6: memref<1x128xf32, #tpu.memory_space<vmem>>) attributes {dimension_semantics = [#tpu.dimension_semantics<parallel>], iteration_bounds = array<i64: 3>, scalar_prefetch = 0 : i64, scratch_operands = 0 : i64, tpu.core_type = #tpu.core_type<tc>, window_params = [{transform_indices = @transform_0, window_bounds = array<i64: 128, 256>}, {pipeline_mode = #tpu.pipeline_mode<synchronous>, transform_indices = @transform_1, window_bounds = array<i64: 256, 256>}, {pipeline_mode = #tpu.pipeline_mode<synchronous>, transform_indices = @transform_2, window_bounds = array<i64: 1, 256>}, {pipeline_mode = #tpu.pipeline_mode<synchronous>, transform_indices = @transform_3, window_bounds = array<i64: 1, 256>}, {transform_indices = @transform_4, window_bounds = array<i64: 1>}, {transform_indices = @transform_5, window_bounds = array<i64: 1, 128>}]} {
    %c0 = arith.constant 0 : index
    %c0_0 = arith.constant 0 : index
    %0 = vector.load %arg1[%c0, %c0_0] : memref<128x256xf32, #tpu.memory_space<vmem>>, vector<128x256xf32>
    %c0_1 = arith.constant 0 : index
    %c0_2 = arith.constant 0 : index
    %1 = vector.load %arg2[%c0_1, %c0_2] : memref<256x256xf32, #tpu.memory_space<vmem>>, vector<256x256xf32>
    %cst = arith.constant dense<0.000000e+00> : vector<128x256xf32>
    %2 = tpu.matmul %0, %1, %cst {dimension_numbers = #tpu.dot_dimension_numbers<[1], [0], [0], [1], [0, 0, 1, 1], [], []>} : vector<128x256xf32>, vector<256x256xf32>, vector<128x256xf32> -> vector<128x256xf32>
    %c0_3 = arith.constant 0 : index
    %c0_4 = arith.constant 0 : index
    %3 = vector.load %arg3[%c0_3, %c0_4] : memref<1x256xf32, #tpu.memory_space<vmem>>, vector<1x256xf32>
    %4 = vector.broadcast %3 : vector<1x256xf32> to vector<128x256xf32>
    %5 = arith.addf %2, %4 : vector<128x256xf32>
    %6 = math.tanh %5 : vector<128x256xf32>
    %c0_5 = arith.constant 0 : index
    %c0_6 = arith.constant 0 : index
    %7 = vector.load %arg4[%c0_5, %c0_6] : memref<1x256xf32, #tpu.memory_space<vmem>>, vector<1x256xf32>
    %8 = vector.broadcast %7 : vector<1x256xf32> to vector<128x256xf32>
    %9 = arith.mulf %6, %8 : vector<128x256xf32>
    %cst_7 = arith.constant dense<0.000000e+00> : vector<128xf32>
    %10 = vector.multi_reduction <add>, %9, %cst_7 [1] : vector<128x256xf32> to vector<128xf32>
    %c0_8 = arith.constant 0 : index
    %11 = memref.load %arg5[%c0_8] : memref<1xf32, #tpu.memory_space<smem>>
    %12 = vector.broadcast %11 : f32 to vector<128xf32>
    %13 = arith.addf %10, %12 : vector<128xf32>
    %14 = vector.shape_cast %13 : vector<128xf32> to vector<1x128xf32>
    %c0_9 = arith.constant 0 : index
    %c0_10 = arith.constant 0 : index
    %15 = vector.load %arg6[%c0_9, %c0_10] : memref<1x128xf32, #tpu.memory_space<vmem>>, vector<1x128xf32>
    tpu.vector_store %arg6[%c0_9, %c0_10], %14 {strides = array<i32>} : memref<1x128xf32, #tpu.memory_space<vmem>>, vector<1x128xf32>,
    return
  }
  func.func @transform_0(%arg0: i32) -> (i32, i32) {
    %c0_i32 = arith.constant 0 : i32
    %c0_i32_0 = arith.constant 0 : i32
    return %arg0, %c0_i32 : i32, i32
  }
  func.func @transform_1(%arg0: i32) -> (i32, i32) {
    %c0_i32 = arith.constant 0 : i32
    %c0_i32_0 = arith.constant 0 : i32
    %c0_i32_1 = arith.constant 0 : i32
    return %c0_i32, %c0_i32_0 : i32, i32
  }
  func.func @transform_2(%arg0: i32) -> (i32, i32) {
    %c0_i32 = arith.constant 0 : i32
    %c0_i32_0 = arith.constant 0 : i32
    %c0_i32_1 = arith.constant 0 : i32
    return %c0_i32, %c0_i32_0 : i32, i32
  }
  func.func @transform_3(%arg0: i32) -> (i32, i32) {
    %c0_i32 = arith.constant 0 : i32
    %c0_i32_0 = arith.constant 0 : i32
    %c0_i32_1 = arith.constant 0 : i32
    return %c0_i32, %c0_i32_0 : i32, i32
  }
  func.func @transform_4(%arg0: i32) -> i32 {
    %c0_i32 = arith.constant 0 : i32
    %c0_i32_0 = arith.constant 0 : i32
    return %c0_i32 : i32
  }
  func.func @transform_5(%arg0: i32) -> (i32, i32) {
    %c0_i32 = arith.constant 0 : i32
    %c0_i32_0 = arith.constant 0 : i32
    return %c0_i32, %arg0 : i32, i32
  }
}

</mosaic_0001>

<llo_original>
// kernel: tpu_custom_call.1
$region0: #{tpu_custom_call.1}
  #allocation0 [shape = 'u32[]', space=smem, size = 0x4, offset = 0x4, fixed_abs, tag = 'smem constant byte address 0x4 - core index']
  #allocation1 [shape = 'u32[72,128]{1,0:T(1,128)}', space=vmem, size = 0x9000, scoped, tag = 'internal scratch']
  #allocation2 [shape = 'f32[1]{0:T(128)S(6)}', space=smem, size = 0x200, scoped, tag = 'scoped memory for tpu_custom_call.1']
  %s0 = inlined_call_operand.hbm [shape: f32[300,256], index: 0, kind: input, shape index: {}]
  %s1 = inlined_call_operand.hbm [shape: f32[256,256], index: 1, kind: input, shape index: {}]
  %s2 = inlined_call_operand.vmem [shape: f32[1,256], index: 2, kind: input, shape index: {}]
  %s3 = inlined_call_operand.vmem [shape: f32[1,256], index: 3, kind: input, shape index: {}]
  %s4 = inlined_call_operand.<no memory space> [shape: f32[1], index: 4, kind: input, shape index: {}]
  %s5 = inlined_call_operand.hbm [shape: f32[1,300], index: 5, kind: output, shape index: {}]
  %s6 = sld [smem:[#allocation0]]
  $region61: #{tpu_custom_call.1} parent=0
    _
  %s8 = ssub.s32 1, %s6
  %s9 = scalar_select 0, %s8, %s6
  %10 = sst [smem:[#allocation2]] %s4
  $region1: #{tpu_custom_call.1} parent=0
    #allocation3 [shape = 'u8[262144]{0}', space=vmem, size = 0x40000, scoped, tag = 'input window, operand 0']
    #allocation4 [shape = 's32[2]{0}', space=sflag, size = 0x8, scoped, tag = 'scoped memory for tpu_custom_call.1']
    #allocation5 [shape = 's32[2]{0}', space=sflag, size = 0x8, scoped, tag = 'scoped memory for tpu_custom_call.1']
    #allocation6 [shape = 'u8[262144]{0}', space=vmem, size = 0x40000, scoped, tag = 'input window, operand 1, single buffered']
    #allocation7 [shape = 's32[1]{0}', space=sflag, size = 0x4, scoped, tag = 'scoped memory for tpu_custom_call.1']
    #allocation8 [shape = 'u8[1024]{0}', space=vmem, size = 0x400, scoped, tag = 'output window, operand 0']
    %11 = vsyncpa [#allocation4], 0
    %s12 = scalar_lea.sflag [#allocation4], 1
    %13 = vsyncpa %s12, 0
    %14 = vsyncpa [#allocation7], 0
    %15 = vsyncpa [#allocation5], 0
    %s16 = scalar_lea.sflag [#allocation5], 1
    %17 = vsyncpa %s16, 0
    loop: start=0, step=1, limit=5
    $region2: #{tpu_custom_call.1} parent=1 // loop_pre_header
      _
    $region3: #{tpu_custom_call.1} parent=1 // loop_header
      %s19 = sphi 0, %s23
      %p20 = scmp.ge.s32.totalorder %s19, 5
      %s29 = sphi 0, %s31
      %s32 = sphi 0, %s29
      %s33 = sphi 0, %s32
      %s49 = sphi 0, %s33
      %s53 = sphi 0, %s53
      %s55 = sphi 0, %s53
      %s56 = sphi 0, %s55
      %s70 = sphi 0, %s56
      %s74 = sphi 0, %s74
      %s76 = sphi 0, %s74
      %s77 = sphi 0, %s76
      %s91 = sphi 0, %s77
      %s95 = sphi 0, %s95
      %s97 = sphi 0, %s95
      %s98 = sphi 0, %s97
      %s112 = sphi 0, %s98
      %s116 = sphi 0, %s116
      %s118 = sphi 0, %s116
      %s119 = sphi 0, %s118
      %s133 = sphi 0, %s119
      %s139 = sphi 0, %s141
      %s142 = sphi 0, %s139
      %s143 = sphi 0, %s142
      %s159 = sphi 0, %s143
    $region4: #{tpu_custom_call.1} parent=1 // loop_header_branch
      %22 = sbr.rel (%p20) target = $region8
    $region5: #{tpu_custom_call.1} parent=1 // loop_body
      %s24 = ssub.s32 %s19, 1
      %s25 = ssub.s32 %s19, 2
      %s26 = sadd.s32 %s19, 1
      %s27 = ssub.s32 %s19, %s26
      %p28 = scmp.eq.s32.totalorder %s27, 0
      %s30 = sadd.s32 %s29, 1
      %s31 = scalar_select %p28, %s29, %s30
      %p34 = pneg %p28
      %p35 = scmp.eq.s32.totalorder %s19, 2
      %p36 = por %p34, %p35
      %p37 = scmp.ne.s32.totalorder %s29, %s32
      %p38 = scmp.eq.s32.totalorder %s19, 0
      %p39 = por %p37, %p38
      %p40 = scmp.ne.s32.totalorder %s29, %s32
      %p41 = scmp.eq.s32.totalorder %s24, 2
      %p42 = por %p40, %p41
      %p43 = scmp.ne.s32.totalorder %s32, %s33
      %p44 = scmp.eq.s32.totalorder %s24, 0
      %p45 = por %p43, %p44
      %p46 = scmp.ne.s32.totalorder %s32, %s33
      %p47 = scmp.eq.s32.totalorder %s25, 2
      %p48 = por %p46, %p47
      %p50 = scmp.ne.s32.totalorder %s33, %s49
      %p51 = scmp.eq.s32.totalorder %s25, 0
      %p52 = por %p50, %p51
      %s54 = sadd.s32 %s53, 1
      %p57 = scmp.eq.s32.totalorder %s19, 2
      %p58 = scmp.ne.s32.totalorder %s53, %s55
      %p59 = scmp.eq.s32.totalorder %s19, 0
      %p60 = por %p58, %p59
      %p61 = scmp.ne.s32.totalorder %s53, %s55
      %p62 = scmp.eq.s32.totalorder %s24, 2
      %p63 = por %p61, %p62
      %p64 = scmp.ne.s32.totalorder %s55, %s56
      %p65 = scmp.eq.s32.totalorder %s24, 0
      %p66 = por %p64, %p65
      %p67 = scmp.ne.s32.totalorder %s55, %s56
      %p68 = scmp.eq.s32.totalorder %s25, 2
      %p69 = por %p67, %p68
      %p71 = scmp.ne.s32.totalorder %s56, %s70
      %p72 = scmp.eq.s32.totalorder %s25, 0
      %p73 = por %p71, %p72
      %s75 = sadd.s32 %s74, 1
      %p78 = scmp.eq.s32.totalorder %s19, 2
      %p79 = scmp.ne.s32.totalorder %s74, %s76
      %p80 = scmp.eq.s32.totalorder %s19, 0
      %p81 = por %p79, %p80
      %p82 = scmp.ne.s32.totalorder %s74, %s76
      %p83 = scmp.eq.s32.totalorder %s24, 2
      %p84 = por %p82, %p83
      %p85 = scmp.ne.s32.totalorder %s76, %s77
      %p86 = scmp.eq.s32.totalorder %s24, 0
      %p87 = por %p85, %p86
      %p88 = scmp.ne.s32.totalorder %s76, %s77
      %p89 = scmp.eq.s32.totalorder %s25, 2
      %p90 = por %p88, %p89
      %p92 = scmp.ne.s32.totalorder %s77, %s91
      %p93 = scmp.eq.s32.totalorder %s25, 0
      %p94 = por %p92, %p93
      %s96 = sadd.s32 %s95, 1
      %p99 = scmp.eq.s32.totalorder %s19, 2
      %p100 = scmp.ne.s32.totalorder %s95, %s97
      %p101 = scmp.eq.s32.totalorder %s19, 0
      %p102 = por %p100, %p101
      %p103 = scmp.ne.s32.totalorder %s95, %s97
      %p104 = scmp.eq.s32.totalorder %s24, 2
      %p105 = por %p103, %p104
      %p106 = scmp.ne.s32.totalorder %s97, %s98
      %p107 = scmp.eq.s32.totalorder %s24, 0
      %p108 = por %p106, %p107
      %p109 = scmp.ne.s32.totalorder %s97, %s98
      %p110 = scmp.eq.s32.totalorder %s25, 2
      %p111 = por %p109, %p110
      %p113 = scmp.ne.s32.totalorder %s98, %s112
      %p114 = scmp.eq.s32.totalorder %s25, 0
      %p115 = por %p113, %p114
      %s117 = sadd.s32 %s116, 1
      %p120 = scmp.eq.s32.totalorder %s19, 2
      %p121 = scmp.ne.s32.totalorder %s116, %s118
      %p122 = scmp.eq.s32.totalorder %s19, 0
      %p123 = por %p121, %p122
      %p124 = scmp.ne.s32.totalorder %s116, %s118
      %p125 = scmp.eq.s32.totalorder %s24, 2
      %p126 = por %p124, %p125
      %p127 = scmp.ne.s32.totalorder %s118, %s119
      %p128 = scmp.eq.s32.totalorder %s24, 0
      %p129 = por %p127, %p128
      %p130 = scmp.ne.s32.totalorder %s118, %s119
      %p131 = scmp.eq.s32.totalorder %s25, 2
      %p132 = por %p130, %p131
      %p134 = scmp.ne.s32.totalorder %s119, %s133
      %p135 = scmp.eq.s32.totalorder %s25, 0
      %p136 = por %p134, %p135
      %s137 = ssub.s32 %s19, %s26
      %p138 = scmp.eq.s32.totalorder %s137, 0
      %s140 = sadd.s32 %s139, 1
      %s141 = scalar_select %p138, %s139, %s140
      %p144 = pneg %p138
      %p145 = scmp.eq.s32.totalorder %s19, 2
      %p146 = por %p144, %p145
      %p147 = scmp.ne.s32.totalorder %s139, %s142
      %p148 = scmp.eq.s32.totalorder %s19, 0
      %p149 = por %p147, %p148
      %p150 = scmp.ne.s32.totalorder %s139, %s142
      %p151 = scmp.eq.s32.totalorder %s24, 2
      %p152 = por %p150, %p151
      %p153 = scmp.ne.s32.totalorder %s142, %s143
      %p154 = scmp.eq.s32.totalorder %s24, 0
      %p155 = por %p153, %p154
      %p156 = scmp.ne.s32.totalorder %s142, %s143
      %p157 = scmp.eq.s32.totalorder %s25, 2
      %p158 = por %p156, %p157
      %p160 = scmp.ne.s32.totalorder %s143, %s159
      %p161 = scmp.eq.s32.totalorder %s25, 0
      %p162 = por %p160, %p161
      %p163 = scmp.le.s32.totalorder 1, %s19
      %p164 = scmp.lt.s32.totalorder %s19, 4
      %p165 = pnand %p163, %p164
      %p166 = pneg %p165
      // Predicated region
      $region9: #{tpu_custom_call.1} parent=5 // pred_check
        _
      $region10: #{tpu_custom_call.1} parent=5 // pred_check_branch
        %168 = sbr.rel (%p165) target = $region12
      $region11: #{tpu_custom_call.1} parent=5 // pred_region
        %s169 = ssub.s32 %s19, 1
        // Predicated region
        $region13: #{tpu_custom_call.1} parent=11 // pred_check
          %p170 = pneg %p66
        $region14: #{tpu_custom_call.1} parent=11 // pred_check_branch
          %172 = sbr.rel (%p170) target = $region16
        $region15: #{tpu_custom_call.1} parent=11 // pred_region
          %174 = vsyncadd [#allocation7], 0
          %s175 = sshll.u32 %s1, 4
          %s176 = int_to_ptr.hbm [resolvable:$true] %s175
          %s177 = sshll.u32 [#allocation6], 4
          %s178 = int_to_ptr.vmem [resolvable:$true] %s177
          %183 = dma.hbm_to_vmem [thread:$0]  %s176, 8192, %s178, [#allocation7], 256, 256, 16
        $region16: #{tpu_custom_call.1} parent=11 // pred_fallthru
          _
        // Predicated region
        $region17: #{tpu_custom_call.1} parent=11 // pred_check
          %p184 = pneg %p87
        $region18: #{tpu_custom_call.1} parent=11 // pred_check_branch
          %186 = sbr.rel (%p184) target = $region20
        $region19: #{tpu_custom_call.1} parent=11 // pred_region
          _
        $region20: #{tpu_custom_call.1} parent=11 // pred_fallthru
          _
        // Predicated region
        $region21: #{tpu_custom_call.1} parent=11 // pred_check
          %p187 = pneg %p108
        $region22: #{tpu_custom_call.1} parent=11 // pred_check_branch
          %189 = sbr.rel (%p187) target = $region24
        $region23: #{tpu_custom_call.1} parent=11 // pred_region
          _
        $region24: #{tpu_custom_call.1} parent=11 // pred_fallthru
          _
        // Predicated region
        $region25: #{tpu_custom_call.1} parent=11 // pred_check
          %p190 = pneg %p129
        $region26: #{tpu_custom_call.1} parent=11 // pred_check_branch
          %192 = sbr.rel (%p190) target = $region28
        $region27: #{tpu_custom_call.1} parent=11 // pred_region
          _
        $region28: #{tpu_custom_call.1} parent=11 // pred_fallthru
          _
      $region12: #{tpu_custom_call.1} parent=5 // pred_fallthru
        _
      %p193 = scmp.lt.s32.totalorder %s19, 3
      // Predicated region
      $region29: #{tpu_custom_call.1} parent=5 // pred_check
        %p194 = pneg %p193
      $region30: #{tpu_custom_call.1} parent=5 // pred_check_branch
        %196 = sbr.rel (%p194) target = $region32
      $region31: #{tpu_custom_call.1} parent=5 // pred_region
        // Predicated region
        $region33: #{tpu_custom_call.1} parent=31 // pred_check
          %p197 = pneg %p39
        $region34: #{tpu_custom_call.1} parent=31 // pred_check_branch
          %199 = sbr.rel (%p197) target = $region36
        $region35: #{tpu_custom_call.1} parent=31 // pred_region
          %s200 = sand.u32 %s29, 1
          %s201 = scalar_lea.sflag [#allocation4], %s200
          %s202 = sand.u32 %s29, 1
          %s203 = smul.addr %s202, 256
          %s204 = scalar_lea.vmem [#allocation3], %s203
          %s205 = smul.u32 16, %s19
          %s206 = ssub.s32 38, %s205
          %p207 = scmp.lt.s32.totalorder %s206, 16
          %s208 = scalar_select %p207, %s206, 16
          %s209 = smul.u32 8, %s208
          %s210 = smul.u32 %s209, 2
          %s211 = ssub.s32 256, %s210
          %s212 = sshll.u32 %s211, 4
          %213 = vsyncadd %s201, %s212
          %p214 = scmp.ne.s32.totalorder 0, %s210
          %s215 = smul.addr %s205, 2
          %s216 = smul.addr %s215, 8
          %s217 = scalar_lea.hbm %s0, %s216
          %s218 = smul.u32 16, %s208
          %s219 = sshll.u32 %s217, 4
          %s220 = int_to_ptr.hbm [resolvable:$true] %s219
          %s221 = sshll.u32 %s204, 4
          %s222 = int_to_ptr.vmem [resolvable:$true] %s221
          %s223 = sshll.u32 %s218, 4
          %227 = dma.hbm_to_vmem [thread:$0]  (%p214), %s220, %s223, %s222, %s201, 256, 256, 16
        $region36: #{tpu_custom_call.1} parent=31 // pred_fallthru
          _
      $region32: #{tpu_custom_call.1} parent=5 // pred_fallthru
        _
      %p228 = scmp.le.s32.totalorder 1, %s19
      %p229 = scmp.lt.s32.totalorder %s19, 4
      %p230 = pnand %p228, %p229
      %p231 = pneg %p230
      // Predicated region
      $region37: #{tpu_custom_call.1} parent=5 // pred_check
        _
      $region38: #{tpu_custom_call.1} parent=5 // pred_check_branch
        %233 = sbr.rel (%p230) target = $region40
      $region39: #{tpu_custom_call.1} parent=5 // pred_region
        %s234 = ssub.s32 %s19, 1
        %s235 = sand.u32 %s32, 1
        %s236 = scalar_lea.sflag [#allocation4], %s235
        %s237 = sand.u32 %s32, 1
        %s238 = smul.addr %s237, 256
        %s239 = scalar_lea.vmem [#allocation3], %s238
        // Predicated region
        $region41: #{tpu_custom_call.1} parent=39 // pred_check
          %p240 = pneg %p45
        $region42: #{tpu_custom_call.1} parent=39 // pred_check_branch
          %242 = sbr.rel (%p240) target = $region44
        $region43: #{tpu_custom_call.1} parent=39 // pred_region
          %244 = dma.done %s236, 4096
        $region44: #{tpu_custom_call.1} parent=39 // pred_fallthru
          _
        // Predicated region
        $region45: #{tpu_custom_call.1} parent=39 // pred_check
          %p245 = pneg %p66
        $region46: #{tpu_custom_call.1} parent=39 // pred_check_branch
          %247 = sbr.rel (%p245) target = $region48
        $region47: #{tpu_custom_call.1} parent=39 // pred_region
          %249 = dma.done [#allocation7], 8192
        $region48: #{tpu_custom_call.1} parent=39 // pred_fallthru
          _
        %s250 = sand.u32 %s32, 1
        %s251 = scalar_lea.sflag [#allocation4], %s250
        %s252 = sand.u32 %s32, 1
        %s253 = smul.addr %s252, 256
        %s254 = scalar_lea.vmem [#allocation3], %s253
        %p255 = pneg %p45
        %p256 = pneg %p42
        %p257 = pneg %p66
        %p258 = pneg %p63
        %p259 = pneg %p87
        %p260 = pneg %p84
        %p261 = pneg %p108
        %p262 = pneg %p105
        %p263 = pneg %p129
        %p264 = pneg %p126
        %p265 = pneg %p155
        %p266 = pneg %p152
        %s267 = sand.u32 %s142, 1
        %s268 = scalar_lea.sflag [#allocation5], %s267
        %s269 = sand.u32 %s142, 1
        %s270 = scalar_lea.vmem [#allocation8], %s269
        %s271 = smul.u32 16, %s24
        %s272 = ssub.s32 38, %s271
        %p273 = scmp.lt.s32.totalorder %s272, 16
        %s274 = scalar_select %p273, %s272, 16
        %s275 = smul.u32 8, %s274
        %s276 = smul.u32 %s275, 2
        %v277 = vld [vmem:[%s239] sm:$0xff]
        %v278 = vld [vmem:[%s239 + $0x8] sm:$0xff]
        %v279 = vld [vmem:[%s239 + $0x10] sm:$0xff]
        %v280 = vld [vmem:[%s239 + $0x18] sm:$0xff]
        %v281 = vld [vmem:[%s239 + $0x20] sm:$0xff]
        %v282 = vld [vmem:[%s239 + $0x28] sm:$0xff]
        %v283 = vld [vmem:[%s239 + $0x30] sm:$0xff]
        %v284 = vld [vmem:[%s239 + $0x38] sm:$0xff]
        %v285 = vld [vmem:[%s239 + $0x40] sm:$0xff]
        %v286 = vld [vmem:[%s239 + $0x48] sm:$0xff]
        %v287 = vld [vmem:[%s239 + $0x50] sm:$0xff]
        %v288 = vld [vmem:[%s239 + $0x58] sm:$0xff]
        %v289 = vld [vmem:[%s239 + $0x60] sm:$0xff]
        %v290 = vld [vmem:[%s239 + $0x68] sm:$0xff]
        %v291 = vld [vmem:[%s239 + $0x70] sm:$0xff]
        %v292 = vld [vmem:[%s239 + $0x78] sm:$0xff]
        %v293 = vld [vmem:[%s239 + $0x80] sm:$0xff]
        %v294 = vld [vmem:[%s239 + $0x88] sm:$0xff]
        %v295 = vld [vmem:[%s239 + $0x90] sm:$0xff]
        %v296 = vld [vmem:[%s239 + $0x98] sm:$0xff]
        %v297 = vld [vmem:[%s239 + $0xa0] sm:$0xff]
        %v298 = vld [vmem:[%s239 + $0xa8] sm:$0xff]
        %v299 = vld [vmem:[%s239 + $0xb0] sm:$0xff]
        %v300 = vld [vmem:[%s239 + $0xb8] sm:$0xff]
        %v301 = vld [vmem:[%s239 + $0xc0] sm:$0xff]
        %v302 = vld [vmem:[%s239 + $0xc8] sm:$0xff]
        %v303 = vld [vmem:[%s239 + $0xd0] sm:$0xff]
        %v304 = vld [vmem:[%s239 + $0xd8] sm:$0xff]
        %v305 = vld [vmem:[%s239 + $0xe0] sm:$0xff]
        %v306 = vld [vmem:[%s239 + $0xe8] sm:$0xff]
        %v307 = vld [vmem:[%s239 + $0xf0] sm:$0xff]
        %v308 = vld [vmem:[%s239 + $0xf8] sm:$0xff]
        %v309 = vld [vmem:[#allocation6] sm:$0xff]
        %v310 = vld [vmem:[#allocation6 + $0x8] sm:$0xff]
        %v311 = vld [vmem:[#allocation6 + $0x10] sm:$0xff]
        %v312 = vld [vmem:[#allocation6 + $0x18] sm:$0xff]
        %v313 = vld [vmem:[#allocation6 + $0x20] sm:$0xff]
        %v314 = vld [vmem:[#allocation6 + $0x28] sm:$0xff]
        %v315 = vld [vmem:[#allocation6 + $0x30] sm:$0xff]
        %v316 = vld [vmem:[#allocation6 + $0x38] sm:$0xff]
        %v317 = vld [vmem:[#allocation6 + $0x40] sm:$0xff]
        %v318 = vld [vmem:[#allocation6 + $0x48] sm:$0xff]
        %v319 = vld [vmem:[#allocation6 + $0x50] sm:$0xff]
        %v320 = vld [vmem:[#allocation6 + $0x58] sm:$0xff]
        %v321 = vld [vmem:[#allocation6 + $0x60] sm:$0xff]
        %v322 = vld [vmem:[#allocation6 + $0x68] sm:$0xff]
        %v323 = vld [vmem:[#allocation6 + $0x70] sm:$0xff]
        %v324 = vld [vmem:[#allocation6 + $0x78] sm:$0xff]
        %v325 = vld [vmem:[#allocation6 + $0x80] sm:$0xff]
        %v326 = vld [vmem:[#allocation6 + $0x88] sm:$0xff]
        %v327 = vld [vmem:[#allocation6 + $0x90] sm:$0xff]
        %v328 = vld [vmem:[#allocation6 + $0x98] sm:$0xff]
        %v329 = vld [vmem:[#allocation6 + $0xa0] sm:$0xff]
        %v330 = vld [vmem:[#allocation6 + $0xa8] sm:$0xff]
        %v331 = vld [vmem:[#allocation6 + $0xb0] sm:$0xff]
        %v332 = vld [vmem:[#allocation6 + $0xb8] sm:$0xff]
        %v333 = vld [vmem:[#allocation6 + $0xc0] sm:$0xff]
        %v334 = vld [vmem:[#allocation6 + $0xc8] sm:$0xff]
        %v335 = vld [vmem:[#allocation6 + $0xd0] sm:$0xff]
        %v336 = vld [vmem:[#allocation6 + $0xd8] sm:$0xff]
        %v337 = vld [vmem:[#allocation6 + $0xe0] sm:$0xff]
        %v338 = vld [vmem:[#allocation6 + $0xe8] sm:$0xff]
        %v339 = vld [vmem:[#allocation6 + $0xf0] sm:$0xff]
        %v340 = vld [vmem:[#allocation6 + $0xf8] sm:$0xff]
        %v341 = vld [vmem:[#allocation6 + $0x100] sm:$0xff]
        %v342 = vld [vmem:[#allocation6 + $0x108] sm:$0xff]
        %v343 = vld [vmem:[#allocation6 + $0x110] sm:$0xff]
        %v344 = vld [vmem:[#allocation6 + $0x118] sm:$0xff]
        %v345 = vld [vmem:[#allocation6 + $0x120] sm:$0xff]
        %v346 = vld [vmem:[#allocation6 + $0x128] sm:$0xff]
        %v347 = vld [vmem:[#allocation6 + $0x130] sm:$0xff]
        %v348 = vld [vmem:[#allocation6 + $0x138] sm:$0xff]
        %v349 = vld [vmem:[#allocation6 + $0x140] sm:$0xff]
        %v350 = vld [vmem:[#allocation6 + $0x148] sm:$0xff]
        %v351 = vld [vmem:[#allocation6 + $0x150] sm:$0xff]
        %v352 = vld [vmem:[#allocation6 + $0x158] sm:$0xff]
        %v353 = vld [vmem:[#allocation6 + $0x160] sm:$0xff]
        %v354 = vld [vmem:[#allocation6 + $0x168] sm:$0xff]
        %v355 = vld [vmem:[#allocation6 + $0x170] sm:$0xff]
        %v356 = vld [vmem:[#allocation6 + $0x178] sm:$0xff]
        %v357 = vld [vmem:[#allocation6 + $0x180] sm:$0xff]
        %v358 = vld [vmem:[#allocation6 + $0x188] sm:$0xff]
        %v359 = vld [vmem:[#allocation6 + $0x190] sm:$0xff]
        %v360 = vld [vmem:[#allocation6 + $0x198] sm:$0xff]
        %v361 = vld [vmem:[#allocation6 + $0x1a0] sm:$0xff]
        %v362 = vld [vmem:[#allocation6 + $0x1a8] sm:$0xff]
        %v363 = vld [vmem:[#allocation6 + $0x1b0] sm:$0xff]
        %v364 = vld [vmem:[#allocation6 + $0x1b8] sm:$0xff]
        %v365 = vld [vmem:[#allocation6 + $0x1c0] sm:$0xff]
        %v366 = vld [vmem:[#allocation6 + $0x1c8] sm:$0xff]
        %v367 = vld [vmem:[#allocation6 + $0x1d0] sm:$0xff]
        %v368 = vld [vmem:[#allocation6 + $0x1d8] sm:$0xff]
        %v369 = vld [vmem:[#allocation6 + $0x1e0] sm:$0xff]
        %v370 = vld [vmem:[#allocation6 + $0x1e8] sm:$0xff]
        %v371 = vld [vmem:[#allocation6 + $0x1f0] sm:$0xff]
        %v372 = vld [vmem:[#allocation6 + $0x1f8] sm:$0xff]
        %v373 = vld [vmem:[%s2] sm:$0x3]
        %v375 = vperm.slane %v373, 0
        %v376 = vperm.slane %v373, 1
        %379 = vmatpush.msra.mxu0 %v339
        %380 = vmatpush.msra.mxu0 %v337
        %381 = vmatpush.msra.mxu0 %v335
        %382 = vmatpush.msra.mxu0 %v333
        %383 = vmatpush.msra.mxu0 %v331
        %384 = vmatpush.msra.mxu0 %v329
        %385 = vmatpush.msra.mxu0 %v327
        %386 = vmatpush.msra.mxu0 %v325
        %387 = vmatpush.msra.mxu0 %v323
        %388 = vmatpush.msra.mxu0 %v321
        %389 = vmatpush.msra.mxu0 %v319
        %390 = vmatpush.msra.mxu0 %v317
        %391 = vmatpush.msra.mxu0 %v315
        %392 = vmatpush.msra.mxu0 %v313
        %393 = vmatpush.msra.mxu0 %v311
        %394 = vmatpush.msra.mxu0 %v309
        %395 = vmatmul.f32.gmra.mxu0 %v277
        %v396 = vpop.f32.mrf.mxu0
        %v397 = vadd.f32 %v375, %v396
        %398 = vmatmul.f32.gmra.mxu0 %v279
        %v399 = vpop.f32.mrf.mxu0
        %v400 = vadd.f32 %v375, %v399
        %401 = vmatmul.f32.gmra.mxu0 %v281
        %v402 = vpop.f32.mrf.mxu0
        %v403 = vadd.f32 %v375, %v402
        %404 = vmatmul.f32.gmra.mxu0 %v283
        %v405 = vpop.f32.mrf.mxu0
        %v406 = vadd.f32 %v375, %v405
        %407 = vmatmul.f32.gmra.mxu0 %v285
        %v408 = vpop.f32.mrf.mxu0
        %v409 = vadd.f32 %v375, %v408
        %410 = vmatmul.f32.gmra.mxu0 %v287
        %v411 = vpop.f32.mrf.mxu0
        %v412 = vadd.f32 %v375, %v411
        %413 = vmatmul.f32.gmra.mxu0 %v289
        %v414 = vpop.f32.mrf.mxu0
        %v415 = vadd.f32 %v375, %v414
        %416 = vmatmul.f32.gmra.mxu0 %v291
        %v417 = vpop.f32.mrf.mxu0
        %v418 = vadd.f32 %v375, %v417
        %419 = vmatmul.f32.gmra.mxu0 %v293
        %v420 = vpop.f32.mrf.mxu0
        %v421 = vadd.f32 %v375, %v420
        %422 = vmatmul.f32.gmra.mxu0 %v295
        %v423 = vpop.f32.mrf.mxu0
        %v424 = vadd.f32 %v375, %v423
        %425 = vmatmul.f32.gmra.mxu0 %v297
        %v426 = vpop.f32.mrf.mxu0
        %v427 = vadd.f32 %v375, %v426
        %428 = vmatmul.f32.gmra.mxu0 %v299
        %v429 = vpop.f32.mrf.mxu0
        %v430 = vadd.f32 %v375, %v429
        %431 = vmatmul.f32.gmra.mxu0 %v301
        %v432 = vpop.f32.mrf.mxu0
        %v433 = vadd.f32 %v375, %v432
        %434 = vmatmul.f32.gmra.mxu0 %v303
        %v435 = vpop.f32.mrf.mxu0
        %v436 = vadd.f32 %v375, %v435
        %437 = vmatmul.f32.gmra.mxu0 %v305
        %v438 = vpop.f32.mrf.mxu0
        %v439 = vadd.f32 %v375, %v438
        %440 = vmatmul.f32.gmra.mxu0 %v307
        %v441 = vpop.f32.mrf.mxu0
        %v442 = vadd.f32 %v375, %v441
        %443 = vdwg.mxu0
        %444 = vmatpush.msra.mxu0 %v371
        %445 = vmatpush.msra.mxu0 %v369
        %446 = vmatpush.msra.mxu0 %v367
        %447 = vmatpush.msra.mxu0 %v365
        %448 = vmatpush.msra.mxu0 %v363
        %449 = vmatpush.msra.mxu0 %v361
        %450 = vmatpush.msra.mxu0 %v359
        %451 = vmatpush.msra.mxu0 %v357
        %452 = vmatpush.msra.mxu0 %v355
        %453 = vmatpush.msra.mxu0 %v353
        %454 = vmatpush.msra.mxu0 %v351
        %455 = vmatpush.msra.mxu0 %v349
        %456 = vmatpush.msra.mxu0 %v347
        %457 = vmatpush.msra.mxu0 %v345
        %458 = vmatpush.msra.mxu0 %v343
        %459 = vmatpush.msra.mxu0 %v341
        %460 = vmatmul.f32.gmra.mxu0 %v278
        %v461 = vpop.f32.mrf.mxu0
        %v462 = vadd.f32 %v397, %v461
        %463 = vmatmul.f32.gmra.mxu0 %v280
        %v464 = vpop.f32.mrf.mxu0
        %v465 = vadd.f32 %v400, %v464
        %466 = vmatmul.f32.gmra.mxu0 %v282
        %v467 = vpop.f32.mrf.mxu0
        %v468 = vadd.f32 %v403, %v467
        %469 = vmatmul.f32.gmra.mxu0 %v284
        %v470 = vpop.f32.mrf.mxu0
        %v471 = vadd.f32 %v406, %v470
        %472 = vmatmul.f32.gmra.mxu0 %v286
        %v473 = vpop.f32.mrf.mxu0
        %v474 = vadd.f32 %v409, %v473
        %475 = vmatmul.f32.gmra.mxu0 %v288
        %v476 = vpop.f32.mrf.mxu0
        %v477 = vadd.f32 %v412, %v476
        %478 = vmatmul.f32.gmra.mxu0 %v290
        %v479 = vpop.f32.mrf.mxu0
        %v480 = vadd.f32 %v415, %v479
        %481 = vmatmul.f32.gmra.mxu0 %v292
        %v482 = vpop.f32.mrf.mxu0
        %v483 = vadd.f32 %v418, %v482
        %484 = vmatmul.f32.gmra.mxu0 %v294
        %v485 = vpop.f32.mrf.mxu0
        %v486 = vadd.f32 %v421, %v485
        %487 = vmatmul.f32.gmra.mxu0 %v296
        %v488 = vpop.f32.mrf.mxu0
        %v489 = vadd.f32 %v424, %v488
        %490 = vmatmul.f32.gmra.mxu0 %v298
        %v491 = vpop.f32.mrf.mxu0
        %v492 = vadd.f32 %v427, %v491
        %493 = vmatmul.f32.gmra.mxu0 %v300
        %v494 = vpop.f32.mrf.mxu0
        %v495 = vadd.f32 %v430, %v494
        %496 = vmatmul.f32.gmra.mxu0 %v302
        %v497 = vpop.f32.mrf.mxu0
        %v498 = vadd.f32 %v433, %v497
        %499 = vmatmul.f32.gmra.mxu0 %v304
        %v500 = vpop.f32.mrf.mxu0
        %v501 = vadd.f32 %v436, %v500
        %502 = vmatmul.f32.gmra.mxu0 %v306
        %v503 = vpop.f32.mrf.mxu0
        %v504 = vadd.f32 %v439, %v503
        %505 = vmatmul.f32.gmra.mxu0 %v308
        %v506 = vpop.f32.mrf.mxu0
        %v507 = vadd.f32 %v442, %v506
        %508 = vdwg.mxu0
        %509 = vmatpush.msra.mxu0 %v340
        %510 = vmatpush.msra.mxu0 %v338
        %511 = vmatpush.msra.mxu0 %v336
        %512 = vmatpush.msra.mxu0 %v334
        %513 = vmatpush.msra.mxu0 %v332
        %514 = vmatpush.msra.mxu0 %v330
        %515 = vmatpush.msra.mxu0 %v328
        %516 = vmatpush.msra.mxu0 %v326
        %517 = vmatpush.msra.mxu0 %v324
        %518 = vmatpush.msra.mxu0 %v322
        %519 = vmatpush.msra.mxu0 %v320
        %520 = vmatpush.msra.mxu0 %v318
        %521 = vmatpush.msra.mxu0 %v316
        %522 = vmatpush.msra.mxu0 %v314
        %523 = vmatpush.msra.mxu0 %v312
        %524 = vmatpush.msra.mxu0 %v310
        %525 = vmatmul.f32.gmra.mxu0 %v277
        %v526 = vpop.f32.mrf.mxu0
        %v527 = vadd.f32 %v376, %v526
        %528 = vmatmul.f32.gmra.mxu0 %v279
        %v529 = vpop.f32.mrf.mxu0
        %v530 = vadd.f32 %v376, %v529
        %531 = vmatmul.f32.gmra.mxu0 %v281
        %v532 = vpop.f32.mrf.mxu0
        %v533 = vadd.f32 %v376, %v532
        %534 = vmatmul.f32.gmra.mxu0 %v283
        %v535 = vpop.f32.mrf.mxu0
        %v536 = vadd.f32 %v376, %v535
        %537 = vmatmul.f32.gmra.mxu0 %v285
        %v538 = vpop.f32.mrf.mxu0
        %v539 = vadd.f32 %v376, %v538
        %540 = vmatmul.f32.gmra.mxu0 %v287
        %v541 = vpop.f32.mrf.mxu0
        %v542 = vadd.f32 %v376, %v541
        %543 = vmatmul.f32.gmra.mxu0 %v289
        %v544 = vpop.f32.mrf.mxu0
        %v545 = vadd.f32 %v376, %v544
        %546 = vmatmul.f32.gmra.mxu0 %v291
        %v547 = vpop.f32.mrf.mxu0
        %v548 = vadd.f32 %v376, %v547
        %549 = vmatmul.f32.gmra.mxu0 %v293
        %v550 = vpop.f32.mrf.mxu0
        %v551 = vadd.f32 %v376, %v550
        %552 = vmatmul.f32.gmra.mxu0 %v295
        %v553 = vpop.f32.mrf.mxu0
        %v554 = vadd.f32 %v376, %v553
        %555 = vmatmul.f32.gmra.mxu0 %v297
        %v556 = vpop.f32.mrf.mxu0
        %v557 = vadd.f32 %v376, %v556
        %558 = vmatmul.f32.gmra.mxu0 %v299
        %v559 = vpop.f32.mrf.mxu0
        %v560 = vadd.f32 %v376, %v559
        %561 = vmatmul.f32.gmra.mxu0 %v301
        %v562 = vpop.f32.mrf.mxu0
        %v563 = vadd.f32 %v376, %v562
        %564 = vmatmul.f32.gmra.mxu0 %v303
        %v565 = vpop.f32.mrf.mxu0
        %v566 = vadd.f32 %v376, %v565
        %567 = vmatmul.f32.gmra.mxu0 %v305
        %v568 = vpop.f32.mrf.mxu0
        %v569 = vadd.f32 %v376, %v568
        %570 = vmatmul.f32.gmra.mxu0 %v307
        %v571 = vpop.f32.mrf.mxu0
        %v572 = vadd.f32 %v376, %v571
        %573 = vdwg.mxu0
        %574 = vmatpush.msra.mxu0 %v372
        %575 = vmatpush.msra.mxu0 %v370
        %576 = vmatpush.msra.mxu0 %v368
        %577 = vmatpush.msra.mxu0 %v366
        %578 = vmatpush.msra.mxu0 %v364
        %579 = vmatpush.msra.mxu0 %v362
        %580 = vmatpush.msra.mxu0 %v360
        %581 = vmatpush.msra.mxu0 %v358
        %582 = vmatpush.msra.mxu0 %v356
        %583 = vmatpush.msra.mxu0 %v354
        %584 = vmatpush.msra.mxu0 %v352
        %585 = vmatpush.msra.mxu0 %v350
        %586 = vmatpush.msra.mxu0 %v348
        %587 = vmatpush.msra.mxu0 %v346
        %588 = vmatpush.msra.mxu0 %v344
        %589 = vmatpush.msra.mxu0 %v342
        %590 = vmatmul.f32.gmra.mxu0 %v278
        %v591 = vpop.f32.mrf.mxu0
        %v592 = vadd.f32 %v527, %v591
        %593 = vmatmul.f32.gmra.mxu0 %v280
        %v594 = vpop.f32.mrf.mxu0
        %v595 = vadd.f32 %v530, %v594
        %596 = vmatmul.f32.gmra.mxu0 %v282
        %v597 = vpop.f32.mrf.mxu0
        %v598 = vadd.f32 %v533, %v597
        %599 = vmatmul.f32.gmra.mxu0 %v284
        %v600 = vpop.f32.mrf.mxu0
        %v601 = vadd.f32 %v536, %v600
        %602 = vmatmul.f32.gmra.mxu0 %v286
        %v603 = vpop.f32.mrf.mxu0
        %v604 = vadd.f32 %v539, %v603
        %605 = vmatmul.f32.gmra.mxu0 %v288
        %v606 = vpop.f32.mrf.mxu0
        %v607 = vadd.f32 %v542, %v606
        %608 = vmatmul.f32.gmra.mxu0 %v290
        %v609 = vpop.f32.mrf.mxu0
        %v610 = vadd.f32 %v545, %v609
        %611 = vmatmul.f32.gmra.mxu0 %v292
        %v612 = vpop.f32.mrf.mxu0
        %v613 = vadd.f32 %v548, %v612
        %614 = vmatmul.f32.gmra.mxu0 %v294
        %v615 = vpop.f32.mrf.mxu0
        %v616 = vadd.f32 %v551, %v615
        %617 = vmatmul.f32.gmra.mxu0 %v296
        %v618 = vpop.f32.mrf.mxu0
        %v619 = vadd.f32 %v554, %v618
        %620 = vmatmul.f32.gmra.mxu0 %v298
        %v621 = vpop.f32.mrf.mxu0
        %v622 = vadd.f32 %v557, %v621
        %623 = vmatmul.f32.gmra.mxu0 %v300
        %v624 = vpop.f32.mrf.mxu0
        %v625 = vadd.f32 %v560, %v624
        %626 = vmatmul.f32.gmra.mxu0 %v302
        %v627 = vpop.f32.mrf.mxu0
        %v628 = vadd.f32 %v563, %v627
        %629 = vmatmul.f32.gmra.mxu0 %v304
        %v630 = vpop.f32.mrf.mxu0
        %v631 = vadd.f32 %v566, %v630
        %632 = vmatmul.f32.gmra.mxu0 %v306
        %v633 = vpop.f32.mrf.mxu0
        %v634 = vadd.f32 %v569, %v633
        %635 = vmatmul.f32.gmra.mxu0 %v308
        %v636 = vpop.f32.mrf.mxu0
        %v637 = vadd.f32 %v572, %v636
        %638 = vdwg.mxu0
        %v639 = vtanh.pop %v462
        %v640 = vtanh.pop %v592
        %v641 = vtanh.pop %v465
        %v642 = vtanh.pop %v595
        %v643 = vtanh.pop %v468
        %v644 = vtanh.pop %v598
        %v645 = vtanh.pop %v471
        %v646 = vtanh.pop %v601
        %v647 = vtanh.pop %v474
        %v648 = vtanh.pop %v604
        %v649 = vtanh.pop %v477
        %v650 = vtanh.pop %v607
        %v651 = vtanh.pop %v480
        %v652 = vtanh.pop %v610
        %v653 = vtanh.pop %v483
        %v654 = vtanh.pop %v613
        %v655 = vtanh.pop %v486
        %v656 = vtanh.pop %v616
        %v657 = vtanh.pop %v489
        %v658 = vtanh.pop %v619
        %v659 = vtanh.pop %v492
        %v660 = vtanh.pop %v622
        %v661 = vtanh.pop %v495
        %v662 = vtanh.pop %v625
        %v663 = vtanh.pop %v498
        %v664 = vtanh.pop %v628
        %v665 = vtanh.pop %v501
        %v666 = vtanh.pop %v631
        %v667 = vtanh.pop %v504
        %v668 = vtanh.pop %v634
        %v669 = vtanh.pop %v507
        %v670 = vtanh.pop %v637
        %v671 = vld [vmem:[%s3] sm:$0x3]
        %v673 = vperm.slane %v671, 0
        %v674 = vperm.slane %v671, 1
        %v677 = vmul.f32 %v639, %v673
        %v678 = vmul.f32 %v640, %v674
        %v679 = vmul.f32 %v641, %v673
        %v680 = vmul.f32 %v642, %v674
        %v681 = vmul.f32 %v643, %v673
        %v682 = vmul.f32 %v644, %v674
        %v683 = vmul.f32 %v645, %v673
        %v684 = vmul.f32 %v646, %v674
        %v685 = vmul.f32 %v647, %v673
        %v686 = vmul.f32 %v648, %v674
        %v687 = vmul.f32 %v649, %v673
        %v688 = vmul.f32 %v650, %v674
        %v689 = vmul.f32 %v651, %v673
        %v690 = vmul.f32 %v652, %v674
        %v691 = vmul.f32 %v653, %v673
        %v692 = vmul.f32 %v654, %v674
        %v693 = vmul.f32 %v655, %v673
        %v694 = vmul.f32 %v656, %v674
        %v695 = vmul.f32 %v657, %v673
        %v696 = vmul.f32 %v658, %v674
        %v697 = vmul.f32 %v659, %v673
        %v698 = vmul.f32 %v660, %v674
        %v699 = vmul.f32 %v661, %v673
        %v700 = vmul.f32 %v662, %v674
        %v701 = vmul.f32 %v663, %v673
        %v702 = vmul.f32 %v664, %v674
        %v703 = vmul.f32 %v665, %v673
        %v704 = vmul.f32 %v666, %v674
        %v705 = vmul.f32 %v667, %v673
        %v706 = vmul.f32 %v668, %v674
        %v707 = vmul.f32 %v669, %v673
        %v708 = vmul.f32 %v670, %v674
        %v709 = vadd.f32 %v677, %v678
        %710 = vadd.xlane.f32.xlu0 %v709
        %v711 = vpop.xlane.xlu0 %710
        %v712 = vadd.f32 %v679, %v680
        %713 = vadd.xlane.f32.xlu0 %v712
        %v714 = vpop.xlane.xlu0 %713
        %v715 = vadd.f32 %v681, %v682
        %716 = vadd.xlane.f32.xlu0 %v715
        %v717 = vpop.xlane.xlu0 %716
        %v718 = vadd.f32 %v683, %v684
        %719 = vadd.xlane.f32.xlu0 %v718
        %v720 = vpop.xlane.xlu0 %719
        %v721 = vadd.f32 %v685, %v686
        %722 = vadd.xlane.f32.xlu0 %v721
        %v723 = vpop.xlane.xlu0 %722
        %v724 = vadd.f32 %v687, %v688
        %725 = vadd.xlane.f32.xlu0 %v724
        %v726 = vpop.xlane.xlu0 %725
        %v727 = vadd.f32 %v689, %v690
        %728 = vadd.xlane.f32.xlu0 %v727
        %v729 = vpop.xlane.xlu0 %728
        %v730 = vadd.f32 %v691, %v692
        %731 = vadd.xlane.f32.xlu0 %v730
        %v732 = vpop.xlane.xlu0 %731
        %v733 = vadd.f32 %v693, %v694
        %734 = vadd.xlane.f32.xlu0 %v733
        %v735 = vpop.xlane.xlu0 %734
        %v736 = vadd.f32 %v695, %v696
        %737 = vadd.xlane.f32.xlu0 %v736
        %v738 = vpop.xlane.xlu0 %737
        %v739 = vadd.f32 %v697, %v698
        %740 = vadd.xlane.f32.xlu0 %v739
        %v741 = vpop.xlane.xlu0 %740
        %v742 = vadd.f32 %v699, %v700
        %743 = vadd.xlane.f32.xlu0 %v742
        %v744 = vpop.xlane.xlu0 %743
        %v745 = vadd.f32 %v701, %v702
        %746 = vadd.xlane.f32.xlu0 %v745
        %v747 = vpop.xlane.xlu0 %746
        %v748 = vadd.f32 %v703, %v704
        %749 = vadd.xlane.f32.xlu0 %v748
        %v750 = vpop.xlane.xlu0 %749
        %v751 = vadd.f32 %v705, %v706
        %752 = vadd.xlane.f32.xlu0 %v751
        %v753 = vpop.xlane.xlu0 %752
        %v754 = vadd.f32 %v707, %v708
        %755 = vadd.xlane.f32.xlu0 %v754
        %v756 = vpop.xlane.xlu0 %755
        %s757 = sld [smem:[#allocation2]]
        %v758 = vstv %s757
        %v759 = vadd.f32 %v711, %v758
        %v760 = vadd.f32 %v714, %v758
        %v761 = vadd.f32 %v717, %v758
        %v762 = vadd.f32 %v720, %v758
        %v763 = vadd.f32 %v723, %v758
        %v764 = vadd.f32 %v726, %v758
        %v765 = vadd.f32 %v729, %v758
        %v766 = vadd.f32 %v732, %v758
        %v767 = vadd.f32 %v735, %v758
        %v768 = vadd.f32 %v738, %v758
        %v769 = vadd.f32 %v741, %v758
        %v770 = vadd.f32 %v744, %v758
        %v771 = vadd.f32 %v747, %v758
        %v772 = vadd.f32 %v750, %v758
        %v773 = vadd.f32 %v753, %v758
        %v774 = vadd.f32 %v756, %v758
        %v791 = vlaneseq
        %v792 = vand.u32 %v791, 127
        %v793 = vperm.slane %v759, %v792
        %v794 = vadd.s32 %v792, 4294967288
        %v795 = vperm.slane %v760, %v794
        %vm796 = vcmask 130112
        %v797 = vsel %vm796, %v795, %v793
        %v798 = vadd.s32 %v792, 4294967280
        %v799 = vperm.slane %v761, %v798
        %vm800 = vcmask 195712
        %v801 = vsel %vm800, %v799, %v797
        %v802 = vadd.s32 %v792, 4294967272
        %v803 = vperm.slane %v762, %v802
        %vm804 = vcmask 261312
        %v805 = vsel %vm804, %v803, %v801
        %v806 = vadd.s32 %v792, 4294967264
        %v807 = vperm.slane %v763, %v806
        %vm808 = vcmask 326912
        %v809 = vsel %vm808, %v807, %v805
        %v810 = vadd.s32 %v792, 4294967256
        %v811 = vperm.slane %v764, %v810
        %vm812 = vcmask 392512
        %v813 = vsel %vm812, %v811, %v809
        %v814 = vadd.s32 %v792, 4294967248
        %v815 = vperm.slane %v765, %v814
        %vm816 = vcmask 458112
        %v817 = vsel %vm816, %v815, %v813
        %v818 = vadd.s32 %v792, 4294967240
        %v819 = vperm.slane %v766, %v818
        %vm820 = vcmask 523712
        %v821 = vsel %vm820, %v819, %v817
        %v822 = vadd.s32 %v792, 4294967232
        %v823 = vperm.slane %v767, %v822
        %vm824 = vcmask 589312
        %v825 = vsel %vm824, %v823, %v821
        %v826 = vadd.s32 %v792, 4294967224
        %v827 = vperm.slane %v768, %v826
        %vm828 = vcmask 654912
        %v829 = vsel %vm828, %v827, %v825
        %v830 = vadd.s32 %v792, 4294967216
        %v831 = vperm.slane %v769, %v830
        %vm832 = vcmask 720512
        %v833 = vsel %vm832, %v831, %v829
        %v834 = vadd.s32 %v792, 4294967208
        %v835 = vperm.slane %v770, %v834
        %vm836 = vcmask 786112
        %v837 = vsel %vm836, %v835, %v833
        %v838 = vadd.s32 %v792, 4294967200
        %v839 = vperm.slane %v771, %v838
        %vm840 = vcmask 851712
        %v841 = vsel %vm840, %v839, %v837
        %v842 = vadd.s32 %v792, 4294967192
        %v843 = vperm.slane %v772, %v842
        %vm844 = vcmask 917312
        %v845 = vsel %vm844, %v843, %v841
        %v846 = vadd.s32 %v792, 4294967184
        %v847 = vperm.slane %v773, %v846
        %vm848 = vcmask 982912
        %v849 = vsel %vm848, %v847, %v845
        %v850 = vadd.s32 %v792, 4294967176
        %v851 = vperm.slane %v774, %v850
        %vm852 = vcmask 1048512
        %v853 = vsel %vm852, %v851, %v849
        %855 = vst [vmem:[%s270] sm:$0x1] %v853
        %s856 = sand.u32 %s142, 1
        %s857 = scalar_lea.sflag [#allocation5], %s856
        %s858 = sand.u32 %s142, 1
        %s859 = scalar_lea.vmem [#allocation8], %s858
        // Predicated region
        $region49: #{tpu_custom_call.1} parent=39 // pred_check
          %p860 = pneg %p152
        $region50: #{tpu_custom_call.1} parent=39 // pred_check_branch
          %862 = sbr.rel (%p860) target = $region52
        $region51: #{tpu_custom_call.1} parent=39 // pred_region
          %864 = vsyncadd %s857, 0
          %s865 = scalar_lea.hbm %s5, %s24
          %s867 = sshll.u32 %s859, 4
          %s868 = int_to_ptr.vmem [resolvable:$true] %s867
          %s869 = sshll.u32 %s865, 4
          %s870 = int_to_ptr.hbm [resolvable:$true] %s869
          %872 = dma.vmem_to_hbm [thread:$0]  %s868, 16, %s870, %s857
        $region52: #{tpu_custom_call.1} parent=39 // pred_fallthru
          _
      $region40: #{tpu_custom_call.1} parent=5 // pred_fallthru
        _
      %p873 = scmp.le.s32.totalorder 2, %s19
      // Predicated region
      $region53: #{tpu_custom_call.1} parent=5 // pred_check
        %p874 = pneg %p873
      $region54: #{tpu_custom_call.1} parent=5 // pred_check_branch
        %876 = sbr.rel (%p874) target = $region56
      $region55: #{tpu_custom_call.1} parent=5 // pred_region
        %s877 = ssub.s32 %s19, 2
        // Predicated region
        $region57: #{tpu_custom_call.1} parent=55 // pred_check
          %p878 = pneg %p158
        $region58: #{tpu_custom_call.1} parent=55 // pred_check_branch
          %880 = sbr.rel (%p878) target = $region60
        $region59: #{tpu_custom_call.1} parent=55 // pred_region
          %s881 = sand.u32 %s143, 1
          %s882 = scalar_lea.sflag [#allocation5], %s881
          %s883 = sand.u32 %s143, 1
          %s884 = scalar_lea.vmem [#allocation8], %s883
          %886 = dma.done %s882, 16
        $region60: #{tpu_custom_call.1} parent=55 // pred_fallthru
          _
      $region56: #{tpu_custom_call.1} parent=5 // pred_fallthru
        _
    $region6: #{tpu_custom_call.1} parent=1 // loop_footer
      %s23 = sadd.s32 1, %s19
    $region7: #{tpu_custom_call.1} parent=1 // loop_footer_branch
      %18 = sbr.rel target = $region3
    $region8: #{tpu_custom_call.1} parent=1 // loop_exit
      _
    %887 = vsyncpa [#allocation4], 1
    %s888 = scalar_lea.sflag [#allocation4], 1
    %889 = vsyncpa %s888, 1
    %890 = vsyncpa [#allocation7], 1
    %891 = vsyncpa [#allocation5], 1
    %s892 = scalar_lea.sflag [#allocation5], 1
    %893 = vsyncpa %s892, 1

// kernel: tpu_custom_call.1
$region0: #{tpu_custom_call.1}
  #allocation0 [shape = 'u32[]', space=smem, size = 0x4, offset = 0x4, fixed_abs, tag = 'smem constant byte address 0x4 - core index']
  #allocation1 [shape = 'u32[72,128]{1,0:T(1,128)}', space=vmem, size = 0x9000, scoped, tag = 'internal scratch']
  #allocation2 [shape = 'f32[1]{0:T(128)S(6)}', space=smem, size = 0x200, scoped, tag = 'scoped memory for tpu_custom_call.1']
  %s0 = inlined_call_operand.hbm [shape: f32[300,256], index: 0, kind: input, shape index: {}]
  %s1 = inlined_call_operand.hbm [shape: f32[256,256], index: 1, kind: input, shape index: {}]
  %s2 = inlined_call_operand.vmem [shape: f32[1,256], index: 2, kind: input, shape index: {}]
  %s3 = inlined_call_operand.vmem [shape: f32[1,256], index: 3, kind: input, shape index: {}]
  %s4 = inlined_call_operand.<no memory space> [shape: f32[1], index: 4, kind: input, shape index: {}]
  %s5 = inlined_call_operand.hbm [shape: f32[1,300], index: 5, kind: output, shape index: {}]
  %s6 = sld [smem:[#allocation0]]
  $region61: #{tpu_custom_call.1} parent=0
    _
  %s8 = ssub.s32 1, %s6
  %s9 = scalar_select 0, %s8, %s6
  %10 = sst [smem:[#allocation2]] %s4
  $region1: #{tpu_custom_call.1} parent=0
    #allocation3 [shape = 'u8[262144]{0}', space=vmem, size = 0x40000, scoped, tag = 'input window, operand 0']
    #allocation4 [shape = 's32[2]{0}', space=sflag, size = 0x8, scoped, tag = 'scoped memory for tpu_custom_call.1']
    #allocation5 [shape = 's32[2]{0}', space=sflag, size = 0x8, scoped, tag = 'scoped memory for tpu_custom_call.1']
    #allocation6 [shape = 'u8[262144]{0}', space=vmem, size = 0x40000, scoped, tag = 'input window, operand 1, single buffered']
    #allocation7 [shape = 's32[1]{0}', space=sflag, size = 0x4, scoped, tag = 'scoped memory for tpu_custom_call.1']
    #allocation8 [shape = 'u8[1024]{0}', space=vmem, size = 0x400, scoped, tag = 'output window, operand 0']
    %11 = vsyncpa [#allocation4], 0
    %s12 = scalar_lea.sflag [#allocation4], 1
    %13 = vsyncpa %s12, 0
    %14 = vsyncpa [#allocation7], 0
    %15 = vsyncpa [#allocation5], 0
    %s16 = scalar_lea.sflag [#allocation5], 1
    %17 = vsyncpa %s16, 0
    loop: start=0, step=1, limit=5
    $region2: #{tpu_custom_call.1} parent=1 // loop_pre_header
      _
    $region3: #{tpu_custom_call.1} parent=1 // loop_header
      %s19 = sphi 0, %s23
      %p20 = scmp.ge.s32.totalorder %s19, 5
      %s29 = sphi 0, %s31
      %s32 = sphi 0, %s29
      %s33 = sphi 0, %s32
      %s49 = sphi 0, %s33
      %s53 = sphi 0, %s53
      %s55 = sphi 0, %s53
      %s56 = sphi 0, %s55
      %s70 = sphi 0, %s56
      %s74 = sphi 0, %s74
      %s76 = sphi 0, %s74
      %s77 = sphi 0, %s76
      %s91 = sphi 0, %s77
      %s95 = sphi 0, %s95
      %s97 = sphi 0, %s95
      %s98 = sphi 0, %s97
      %s112 = sphi 0, %s98
      %s116 = sphi 0, %s116
      %s118 = sphi 0, %s116
      %s119 = sphi 0, %s118
      %s133 = sphi 0, %s119
      %s139 = sphi 0, %s141
      %s142 = sphi 0, %s139
      %s143 = sphi 0, %s142
      %s159 = sphi 0, %s143
    $region4: #{tpu_custom_call.1} parent=1 // loop_header_branch
      %22 = sbr.rel (%p20) target = $region8
    $region5: #{tpu_custom_call.1} parent=1 // loop_body
      %s24 = ssub.s32 %s19, 1
      %s25 = ssub.s32 %s19, 2
      %s26 = sadd.s32 %s19, 1
      %s27 = ssub.s32 %s19, %s26
      %p28 = scmp.eq.s32.totalorder %s27, 0
      %s30 = sadd.s32 %s29, 1
      %s31 = scalar_select %p28, %s29, %s30
      %p34 = pneg %p28
      %p35 = scmp.eq.s32.totalorder %s19, 2
      %p36 = por %p34, %p35
      %p37 = scmp.ne.s32.totalorder %s29, %s32
      %p38 = scmp.eq.s32.totalorder %s19, 0
      %p39 = por %p37, %p38
      %p40 = scmp.ne.s32.totalorder %s29, %s32
      %p41 = scmp.eq.s32.totalorder %s24, 2
      %p42 = por %p40, %p41
      %p43 = scmp.ne.s32.totalorder %s32, %s33
      %p44 = scmp.eq.s32.totalorder %s24, 0
      %p45 = por %p43, %p44
      %p46 = scmp.ne.s32.totalorder %s32, %s33
      %p47 = scmp.eq.s32.totalorder %s25, 2
      %p48 = por %p46, %p47
      %p50 = scmp.ne.s32.totalorder %s33, %s49
      %p51 = scmp.eq.s32.totalorder %s25, 0
      %p52 = por %p50, %p51
      %s54 = sadd.s32 %s53, 1
      %p57 = scmp.eq.s32.totalorder %s19, 2
      %p58 = scmp.ne.s32.totalorder %s53, %s55
      %p59 = scmp.eq.s32.totalorder %s19, 0
      %p60 = por %p58, %p59
      %p61 = scmp.ne.s32.totalorder %s53, %s55
      %p62 = scmp.eq.s32.totalorder %s24, 2
      %p63 = por %p61, %p62
      %p64 = scmp.ne.s32.totalorder %s55, %s56
      %p65 = scmp.eq.s32.totalorder %s24, 0
      %p66 = por %p64, %p65
      %p67 = scmp.ne.s32.totalorder %s55, %s56
      %p68 = scmp.eq.s32.totalorder %s25, 2
      %p69 = por %p67, %p68
      %p71 = scmp.ne.s32.totalorder %s56, %s70
      %p72 = scmp.eq.s32.totalorder %s25, 0
      %p73 = por %p71, %p72
      %s75 = sadd.s32 %s74, 1
      %p78 = scmp.eq.s32.totalorder %s19, 2
      %p79 = scmp.ne.s32.totalorder %s74, %s76
      %p80 = scmp.eq.s32.totalorder %s19, 0
      %p81 = por %p79, %p80
      %p82 = scmp.ne.s32.totalorder %s74, %s76
      %p83 = scmp.eq.s32.totalorder %s24, 2
      %p84 = por %p82, %p83
      %p85 = scmp.ne.s32.totalorder %s76, %s77
      %p86 = scmp.eq.s32.totalorder %s24, 0
      %p87 = por %p85, %p86
      %p88 = scmp.ne.s32.totalorder %s76, %s77
      %p89 = scmp.eq.s32.totalorder %s25, 2
      %p90 = por %p88, %p89
      %p92 = scmp.ne.s32.totalorder %s77, %s91
      %p93 = scmp.eq.s32.totalorder %s25, 0
      %p94 = por %p92, %p93
      %s96 = sadd.s32 %s95, 1
      %p99 = scmp.eq.s32.totalorder %s19, 2
      %p100 = scmp.ne.s32.totalorder %s95, %s97
      %p101 = scmp.eq.s32.totalorder %s19, 0
      %p102 = por %p100, %p101
      %p103 = scmp.ne.s32.totalorder %s95, %s97
      %p104 = scmp.eq.s32.totalorder %s24, 2
      %p105 = por %p103, %p104
      %p106 = scmp.ne.s32.totalorder %s97, %s98
      %p107 = scmp.eq.s32.totalorder %s24, 0
      %p108 = por %p106, %p107
      %p109 = scmp.ne.s32.totalorder %s97, %s98
      %p110 = scmp.eq.s32.totalorder %s25, 2
      %p111 = por %p109, %p110
      %p113 = scmp.ne.s32.totalorder %s98, %s112
      %p114 = scmp.eq.s32.totalorder %s25, 0
      %p115 = por %p113, %p114
      %s117 = sadd.s32 %s116, 1
      %p120 = scmp.eq.s32.totalorder %s19, 2
      %p121 = scmp.ne.s32.totalorder %s116, %s118
      %p122 = scmp.eq.s32.totalorder %s19, 0
      %p123 = por %p121, %p122
      %p124 = scmp.ne.s32.totalorder %s116, %s118
      %p125 = scmp.eq.s32.totalorder %s24, 2
      %p126 = por %p124, %p125
      %p127 = scmp.ne.s32.totalorder %s118, %s119
      %p128 = scmp.eq.s32.totalorder %s24, 0
      %p129 = por %p127, %p128
      %p130 = scmp.ne.s32.totalorder %s118, %s119
      %p131 = scmp.eq.s32.totalorder %s25, 2
      %p132 = por %p130, %p131
      %p134 = scmp.ne.s32.totalorder %s119, %s133
      %p135 = scmp.eq.s32.totalorder %s25, 0
      %p136 = por %p134, %p135
      %s137 = ssub.s32 %s19, %s26
      %p138 = scmp.eq.s32.totalorder %s137, 0
      %s140 = sadd.s32 %s139, 1
      %s141 = scalar_select %p138, %s139, %s140
      %p144 = pneg %p138
      %p145 = scmp.eq.s32.totalorder %s19, 2
      %p146 = por %p144, %p145
      %p147 = scmp.ne.s32.totalorder %s139, %s142
      %p148 = scmp.eq.s32.totalorder %s19, 0
      %p149 = por %p147, %p148
      %p150 = scmp.ne.s32.totalorder %s139, %s142
      %p151 = scmp.eq.s32.totalorder %s24, 2
      %p152 = por %p150, %p151
      %p153 = scmp.ne.s32.totalorder %s142, %s143
      %p154 = scmp.eq.s32.totalorder %s24, 0
      %p155 = por %p153, %p154
      %p156 = scmp.ne.s32.totalorder %s142, %s143
      %p157 = scmp.eq.s32.totalorder %s25, 2
      %p158 = por %p156, %p157
      %p160 = scmp.ne.s32.totalorder %s143, %s159
      %p161 = scmp.eq.s32.totalorder %s25, 0
      %p162 = por %p160, %p161
      %p163 = scmp.le.s32.totalorder 1, %s19
      %p164 = scmp.lt.s32.totalorder %s19, 4
      %p165 = pnand %p163, %p164
      %p166 = pneg %p165
      // Predicated region
      $region9: #{tpu_custom_call.1} parent=5 // pred_check
        _
      $region10: #{tpu_custom_call.1} parent=5 // pred_check_branch
        %168 = sbr.rel (%p165) target = $region12
      $region11: #{tpu_custom_call.1} parent=5 // pred_region
        %s169 = ssub.s32 %s19, 1
        // Predicated region
        $region13: #{tpu_custom_call.1} parent=11 // pred_check
          %p170 = pneg %p66
        $region14: #{tpu_custom_call.1} parent=11 // pred_check_branch
          %172 = sbr.rel (%p170) target = $region16
        $region15: #{tpu_custom_call.1} parent=11 // pred_region
          %174 = vsyncadd [#allocation7], 0
          %s175 = sshll.u32 %s1, 4
          %s176 = int_to_ptr.hbm [resolvable:$true] %s175
          %s177 = sshll.u32 [#allocation6], 4
          %s178 = int_to_ptr.vmem [resolvable:$true] %s177
          %183 = dma.hbm_to_vmem [thread:$0]  %s176, 8192, %s178, [#allocation7], 256, 256, 16
        $region16: #{tpu_custom_call.1} parent=11 // pred_fallthru
          _
        // Predicated region
        $region17: #{tpu_custom_call.1} parent=11 // pred_check
          %p184 = pneg %p87
        $region18: #{tpu_custom_call.1} parent=11 // pred_check_branch
          %186 = sbr.rel (%p184) target = $region20
        $region19: #{tpu_custom_call.1} parent=11 // pred_region
          _
        $region20: #{tpu_custom_call.1} parent=11 // pred_fallthru
          _
        // Predicated region
        $region21: #{tpu_custom_call.1} parent=11 // pred_check
          %p187 = pneg %p108
        $region22: #{tpu_custom_call.1} parent=11 // pred_check_branch
          %189 = sbr.rel (%p187) target = $region24
        $region23: #{tpu_custom_call.1} parent=11 // pred_region
          _
        $region24: #{tpu_custom_call.1} parent=11 // pred_fallthru
          _
        // Predicated region
        $region25: #{tpu_custom_call.1} parent=11 // pred_check
          %p190 = pneg %p129
        $region26: #{tpu_custom_call.1} parent=11 // pred_check_branch
          %192 = sbr.rel (%p190) target = $region28
        $region27: #{tpu_custom_call.1} parent=11 // pred_region
          _
        $region28: #{tpu_custom_call.1} parent=11 // pred_fallthru
          _
      $region12: #{tpu_custom_call.1} parent=5 // pred_fallthru
        _
      %p193 = scmp.lt.s32.totalorder %s19, 3
      // Predicated region
      $region29: #{tpu_custom_call.1} parent=5 // pred_check
        %p194 = pneg %p193
      $region30: #{tpu_custom_call.1} parent=5 // pred_check_branch
        %196 = sbr.rel (%p194) target = $region32
      $region31: #{tpu_custom_call.1} parent=5 // pred_region
        // Predicated region
        $region33: #{tpu_custom_call.1} parent=31 // pred_check
          %p197 = pneg %p39
        $region34: #{tpu_custom_call.1} parent=31 // pred_check_branch
          %199 = sbr.rel (%p197) target = $region36
        $region35: #{tpu_custom_call.1} parent=31 // pred_region
          %s200 = sand.u32 %s29, 1
          %s201 = scalar_lea.sflag [#allocation4], %s200
          %s202 = sand.u32 %s29, 1
          %s203 = smul.addr %s202, 256
          %s204 = scalar_lea.vmem [#allocation3], %s203
          %s205 = smul.u32 16, %s19
          %s206 = ssub.s32 38, %s205
          %p207 = scmp.lt.s32.totalorder %s206, 16
          %s208 = scalar_select %p207, %s206, 16
          %s209 = smul.u32 8, %s208
          %s210 = smul.u32 %s209, 2
          %s211 = ssub.s32 256, %s210
          %s212 = sshll.u32 %s211, 4
          %213 = vsyncadd %s201, %s212
          %p214 = scmp.ne.s32.totalorder 0, %s210
          %s215 = smul.addr %s205, 2
          %s216 = smul.addr %s215, 8
          %s217 = scalar_lea.hbm %s0, %s216
          %s218 = smul.u32 16, %s208
          %s219 = sshll.u32 %s217, 4
          %s220 = int_to_ptr.hbm [resolvable:$true] %s219
          %s221 = sshll.u32 %s204, 4
          %s222 = int_to_ptr.vmem [resolvable:$true] %s221
          %s223 = sshll.u32 %s218, 4
          %227 = dma.hbm_to_vmem [thread:$0]  (%p214), %s220, %s223, %s222, %s201, 256, 256, 16
        $region36: #{tpu_custom_call.1} parent=31 // pred_fallthru
          _
      $region32: #{tpu_custom_call.1} parent=5 // pred_fallthru
        _
      %p228 = scmp.le.s32.totalorder 1, %s19
      %p229 = scmp.lt.s32.totalorder %s19, 4
      %p230 = pnand %p228, %p229
      %p231 = pneg %p230
      // Predicated region
      $region37: #{tpu_custom_call.1} parent=5 // pred_check
        _
      $region38: #{tpu_custom_call.1} parent=5 // pred_check_branch
        %233 = sbr.rel (%p230) target = $region40
      $region39: #{tpu_custom_call.1} parent=5 // pred_region
        %s234 = ssub.s32 %s19, 1
        %s235 = sand.u32 %s32, 1
        %s236 = scalar_lea.sflag [#allocation4], %s235
        %s237 = sand.u32 %s32, 1
        %s238 = smul.addr %s237, 256
        %s239 = scalar_lea.vmem [#allocation3], %s238
        // Predicated region
        $region41: #{tpu_custom_call.1} parent=39 // pred_check
          %p240 = pneg %p45
        $region42: #{tpu_custom_call.1} parent=39 // pred_check_branch
          %242 = sbr.rel (%p240) target = $region44
        $region43: #{tpu_custom_call.1} parent=39 // pred_region
          %244 = dma.done %s236, 4096
        $region44: #{tpu_custom_call.1} parent=39 // pred_fallthru
          _
        // Predicated region
        $region45: #{tpu_custom_call.1} parent=39 // pred_check
          %p245 = pneg %p66
        $region46: #{tpu_custom_call.1} parent=39 // pred_check_branch
          %247 = sbr.rel (%p245) target = $region48
        $region47: #{tpu_custom_call.1} parent=39 // pred_region
          %249 = dma.done [#allocation7], 8192
        $region48: #{tpu_custom_call.1} parent=39 // pred_fallthru
          _
        %s250 = sand.u32 %s32, 1
        %s251 = scalar_lea.sflag [#allocation4], %s250
        %s252 = sand.u32 %s32, 1
        %s253 = smul.addr %s252, 256
        %s254 = scalar_lea.vmem [#allocation3], %s253
        %p255 = pneg %p45
        %p256 = pneg %p42
        %p257 = pneg %p66
        %p258 = pneg %p63
        %p259 = pneg %p87
        %p260 = pneg %p84
        %p261 = pneg %p108
        %p262 = pneg %p105
        %p263 = pneg %p129
        %p264 = pneg %p126
        %p265 = pneg %p155
        %p266 = pneg %p152
        %s267 = sand.u32 %s142, 1
        %s268 = scalar_lea.sflag [#allocation5], %s267
        %s269 = sand.u32 %s142, 1
        %s270 = scalar_lea.vmem [#allocation8], %s269
        %s271 = smul.u32 16, %s24
        %s272 = ssub.s32 38, %s271
        %p273 = scmp.lt.s32.totalorder %s272, 16
        %s274 = scalar_select %p273, %s272, 16
        %s275 = smul.u32 8, %s274
        %s276 = smul.u32 %s275, 2
        %v277 = vld [vmem:[%s239] sm:$0xff]
        %v278 = vld [vmem:[%s239 + $0x8] sm:$0xff]
        %v279 = vld [vmem:[%s239 + $0x10] sm:$0xff]
        %v280 = vld [vmem:[%s239 + $0x18] sm:$0xff]
        %v281 = vld [vmem:[%s239 + $0x20] sm:$0xff]
        %v282 = vld [vmem:[%s239 + $0x28] sm:$0xff]
        %v283 = vld [vmem:[%s239 + $0x30] sm:$0xff]
        %v284 = vld [vmem:[%s239 + $0x38] sm:$0xff]
        %v285 = vld [vmem:[%s239 + $0x40] sm:$0xff]
        %v286 = vld [vmem:[%s239 + $0x48] sm:$0xff]
        %v287 = vld [vmem:[%s239 + $0x50] sm:$0xff]
        %v288 = vld [vmem:[%s239 + $0x58] sm:$0xff]
        %v289 = vld [vmem:[%s239 + $0x60] sm:$0xff]
        %v290 = vld [vmem:[%s239 + $0x68] sm:$0xff]
        %v291 = vld [vmem:[%s239 + $0x70] sm:$0xff]
        %v292 = vld [vmem:[%s239 + $0x78] sm:$0xff]
        %v293 = vld [vmem:[%s239 + $0x80] sm:$0xff]
        %v294 = vld [vmem:[%s239 + $0x88] sm:$0xff]
        %v295 = vld [vmem:[%s239 + $0x90] sm:$0xff]
        %v296 = vld [vmem:[%s239 + $0x98] sm:$0xff]
        %v297 = vld [vmem:[%s239 + $0xa0] sm:$0xff]
        %v298 = vld [vmem:[%s239 + $0xa8] sm:$0xff]
        %v299 = vld [vmem:[%s239 + $0xb0] sm:$0xff]
        %v300 = vld [vmem:[%s239 + $0xb8] sm:$0xff]
        %v301 = vld [vmem:[%s239 + $0xc0] sm:$0xff]
        %v302 = vld [vmem:[%s239 + $0xc8] sm:$0xff]
        %v303 = vld [vmem:[%s239 + $0xd0] sm:$0xff]
        %v304 = vld [vmem:[%s239 + $0xd8] sm:$0xff]
        %v305 = vld [vmem:[%s239 + $0xe0] sm:$0xff]
        %v306 = vld [vmem:[%s239 + $0xe8] sm:$0xff]
        %v307 = vld [vmem:[%s239 + $0xf0] sm:$0xff]
        %v308 = vld [vmem:[%s239 + $0xf8] sm:$0xff]
        %v309 = vld [vmem:[#allocation6] sm:$0xff]
        %v310 = vld [vmem:[#allocation6 + $0x8] sm:$0xff]
        %v311 = vld [vmem:[#allocation6 + $0x10] sm:$0xff]
        %v312 = vld [vmem:[#allocation6 + $0x18] sm:$0xff]
        %v313 = vld [vmem:[#allocation6 + $0x20] sm:$0xff]
        %v314 = vld [vmem:[#allocation6 + $0x28] sm:$0xff]
        %v315 = vld [vmem:[#allocation6 + $0x30] sm:$0xff]
        %v316 = vld [vmem:[#allocation6 + $0x38] sm:$0xff]
        %v317 = vld [vmem:[#allocation6 + $0x40] sm:$0xff]
        %v318 = vld [vmem:[#allocation6 + $0x48] sm:$0xff]
        %v319 = vld [vmem:[#allocation6 + $0x50] sm:$0xff]
        %v320 = vld [vmem:[#allocation6 + $0x58] sm:$0xff]
        %v321 = vld [vmem:[#allocation6 + $0x60] sm:$0xff]
        %v322 = vld [vmem:[#allocation6 + $0x68] sm:$0xff]
        %v323 = vld [vmem:[#allocation6 + $0x70] sm:$0xff]
        %v324 = vld [vmem:[#allocation6 + $0x78] sm:$0xff]
        %v325 = vld [vmem:[#allocation6 + $0x80] sm:$0xff]
        %v326 = vld [vmem:[#allocation6 + $0x88] sm:$0xff]
        %v327 = vld [vmem:[#allocation6 + $0x90] sm:$0xff]
        %v328 = vld [vmem:[#allocation6 + $0x98] sm:$0xff]
        %v329 = vld [vmem:[#allocation6 + $0xa0] sm:$0xff]
        %v330 = vld [vmem:[#allocation6 + $0xa8] sm:$0xff]
        %v331 = vld [vmem:[#allocation6 + $0xb0] sm:$0xff]
        %v332 = vld [vmem:[#allocation6 + $0xb8] sm:$0xff]
        %v333 = vld [vmem:[#allocation6 + $0xc0] sm:$0xff]
        %v334 = vld [vmem:[#allocation6 + $0xc8] sm:$0xff]
        %v335 = vld [vmem:[#allocation6 + $0xd0] sm:$0xff]
        %v336 = vld [vmem:[#allocation6 + $0xd8] sm:$0xff]
        %v337 = vld [vmem:[#allocation6 + $0xe0] sm:$0xff]
        %v338 = vld [vmem:[#allocation6 + $0xe8] sm:$0xff]
        %v339 = vld [vmem:[#allocation6 + $0xf0] sm:$0xff]
        %v340 = vld [vmem:[#allocation6 + $0xf8] sm:$0xff]
        %v341 = vld [vmem:[#allocation6 + $0x100] sm:$0xff]
        %v342 = vld [vmem:[#allocation6 + $0x108] sm:$0xff]
        %v343 = vld [vmem:[#allocation6 + $0x110] sm:$0xff]
        %v344 = vld [vmem:[#allocation6 + $0x118] sm:$0xff]
        %v345 = vld [vmem:[#allocation6 + $0x120] sm:$0xff]
        %v346 = vld [vmem:[#allocation6 + $0x128] sm:$0xff]
        %v347 = vld [vmem:[#allocation6 + $0x130] sm:$0xff]
        %v348 = vld [vmem:[#allocation6 + $0x138] sm:$0xff]
        %v349 = vld [vmem:[#allocation6 + $0x140] sm:$0xff]
        %v350 = vld [vmem:[#allocation6 + $0x148] sm:$0xff]
        %v351 = vld [vmem:[#allocation6 + $0x150] sm:$0xff]
        %v352 = vld [vmem:[#allocation6 + $0x158] sm:$0xff]
        %v353 = vld [vmem:[#allocation6 + $0x160] sm:$0xff]
        %v354 = vld [vmem:[#allocation6 + $0x168] sm:$0xff]
        %v355 = vld [vmem:[#allocation6 + $0x170] sm:$0xff]
        %v356 = vld [vmem:[#allocation6 + $0x178] sm:$0xff]
        %v357 = vld [vmem:[#allocation6 + $0x180] sm:$0xff]
        %v358 = vld [vmem:[#allocation6 + $0x188] sm:$0xff]
        %v359 = vld [vmem:[#allocation6 + $0x190] sm:$0xff]
        %v360 = vld [vmem:[#allocation6 + $0x198] sm:$0xff]
        %v361 = vld [vmem:[#allocation6 + $0x1a0] sm:$0xff]
        %v362 = vld [vmem:[#allocation6 + $0x1a8] sm:$0xff]
        %v363 = vld [vmem:[#allocation6 + $0x1b0] sm:$0xff]
        %v364 = vld [vmem:[#allocation6 + $0x1b8] sm:$0xff]
        %v365 = vld [vmem:[#allocation6 + $0x1c0] sm:$0xff]
        %v366 = vld [vmem:[#allocation6 + $0x1c8] sm:$0xff]
        %v367 = vld [vmem:[#allocation6 + $0x1d0] sm:$0xff]
        %v368 = vld [vmem:[#allocation6 + $0x1d8] sm:$0xff]
        %v369 = vld [vmem:[#allocation6 + $0x1e0] sm:$0xff]
        %v370 = vld [vmem:[#allocation6 + $0x1e8] sm:$0xff]
        %v371 = vld [vmem:[#allocation6 + $0x1f0] sm:$0xff]
        %v372 = vld [vmem:[#allocation6 + $0x1f8] sm:$0xff]
        %v373 = vld [vmem:[%s2] sm:$0x3]
        %v375 = vperm.slane %v373, 0
        %v376 = vperm.slane %v373, 1
        %379 = vmatpush.msra.mxu0 %v339
        %380 = vmatpush.msra.mxu0 %v337
        %381 = vmatpush.msra.mxu0 %v335
        %382 = vmatpush.msra.mxu0 %v333
        %383 = vmatpush.msra.mxu0 %v331
        %384 = vmatpush.msra.mxu0 %v329
        %385 = vmatpush.msra.mxu0 %v327
        %386 = vmatpush.msra.mxu0 %v325
        %387 = vmatpush.msra.mxu0 %v323
        %388 = vmatpush.msra.mxu0 %v321
        %389 = vmatpush.msra.mxu0 %v319
        %390 = vmatpush.msra.mxu0 %v317
        %391 = vmatpush.msra.mxu0 %v315
        %392 = vmatpush.msra.mxu0 %v313
        %393 = vmatpush.msra.mxu0 %v311
        %394 = vmatpush.msra.mxu0 %v309
        %395 = vmatmul.f32.gmra.mxu0 %v277
        %v396 = vpop.f32.mrf.mxu0
        %v397 = vadd.f32 %v375, %v396
        %398 = vmatmul.f32.gmra.mxu0 %v279
        %v399 = vpop.f32.mrf.mxu0
        %v400 = vadd.f32 %v375, %v399
        %401 = vmatmul.f32.gmra.mxu0 %v281
        %v402 = vpop.f32.mrf.mxu0
        %v403 = vadd.f32 %v375, %v402
        %404 = vmatmul.f32.gmra.mxu0 %v283
        %v405 = vpop.f32.mrf.mxu0
        %v406 = vadd.f32 %v375, %v405
        %407 = vmatmul.f32.gmra.mxu0 %v285
        %v408 = vpop.f32.mrf.mxu0
        %v409 = vadd.f32 %v375, %v408
        %410 = vmatmul.f32.gmra.mxu0 %v287
        %v411 = vpop.f32.mrf.mxu0
        %v412 = vadd.f32 %v375, %v411
        %413 = vmatmul.f32.gmra.mxu0 %v289
        %v414 = vpop.f32.mrf.mxu0
        %v415 = vadd.f32 %v375, %v414
        %416 = vmatmul.f32.gmra.mxu0 %v291
        %v417 = vpop.f32.mrf.mxu0
        %v418 = vadd.f32 %v375, %v417
        %419 = vmatmul.f32.gmra.mxu0 %v293
        %v420 = vpop.f32.mrf.mxu0
        %v421 = vadd.f32 %v375, %v420
        %422 = vmatmul.f32.gmra.mxu0 %v295
        %v423 = vpop.f32.mrf.mxu0
        %v424 = vadd.f32 %v375, %v423
        %425 = vmatmul.f32.gmra.mxu0 %v297
        %v426 = vpop.f32.mrf.mxu0
        %v427 = vadd.f32 %v375, %v426
        %428 = vmatmul.f32.gmra.mxu0 %v299
        %v429 = vpop.f32.mrf.mxu0
        %v430 = vadd.f32 %v375, %v429
        %431 = vmatmul.f32.gmra.mxu0 %v301
        %v432 = vpop.f32.mrf.mxu0
        %v433 = vadd.f32 %v375, %v432
        %434 = vmatmul.f32.gmra.mxu0 %v303
        %v435 = vpop.f32.mrf.mxu0
        %v436 = vadd.f32 %v375, %v435
        %437 = vmatmul.f32.gmra.mxu0 %v305
        %v438 = vpop.f32.mrf.mxu0
        %v439 = vadd.f32 %v375, %v438
        %440 = vmatmul.f32.gmra.mxu0 %v307
        %v441 = vpop.f32.mrf.mxu0
        %v442 = vadd.f32 %v375, %v441
        %443 = vdwg.mxu0
        %444 = vmatpush.msra.mxu0 %v371
        %445 = vmatpush.msra.mxu0 %v369
        %446 = vmatpush.msra.mxu0 %v367
        %447 = vmatpush.msra.mxu0 %v365
        %448 = vmatpush.msra.mxu0 %v363
        %449 = vmatpush.msra.mxu0 %v361
        %450 = vmatpush.msra.mxu0 %v359
        %451 = vmatpush.msra.mxu0 %v357
        %452 = vmatpush.msra.mxu0 %v355
        %453 = vmatpush.msra.mxu0 %v353
        %454 = vmatpush.msra.mxu0 %v351
        %455 = vmatpush.msra.mxu0 %v349
        %456 = vmatpush.msra.mxu0 %v347
        %457 = vmatpush.msra.mxu0 %v345
        %458 = vmatpush.msra.mxu0 %v343
        %459 = vmatpush.msra.mxu0 %v341
        %460 = vmatmul.f32.gmra.mxu0 %v278
        %v461 = vpop.f32.mrf.mxu0
        %v462 = vadd.f32 %v397, %v461
        %463 = vmatmul.f32.gmra.mxu0 %v280
        %v464 = vpop.f32.mrf.mxu0
        %v465 = vadd.f32 %v400, %v464
        %466 = vmatmul.f32.gmra.mxu0 %v282
        %v467 = vpop.f32.mrf.mxu0
        %v468 = vadd.f32 %v403, %v467
        %469 = vmatmul.f32.gmra.mxu0 %v284
        %v470 = vpop.f32.mrf.mxu0
        %v471 = vadd.f32 %v406, %v470
        %472 = vmatmul.f32.gmra.mxu0 %v286
        %v473 = vpop.f32.mrf.mxu0
        %v474 = vadd.f32 %v409, %v473
        %475 = vmatmul.f32.gmra.mxu0 %v288
        %v476 = vpop.f32.mrf.mxu0
        %v477 = vadd.f32 %v412, %v476
        %478 = vmatmul.f32.gmra.mxu0 %v290
        %v479 = vpop.f32.mrf.mxu0
        %v480 = vadd.f32 %v415, %v479
        %481 = vmatmul.f32.gmra.mxu0 %v292
        %v482 = vpop.f32.mrf.mxu0
        %v483 = vadd.f32 %v418, %v482
        %484 = vmatmul.f32.gmra.mxu0 %v294
        %v485 = vpop.f32.mrf.mxu0
        %v486 = vadd.f32 %v421, %v485
        %487 = vmatmul.f32.gmra.mxu0 %v296
        %v488 = vpop.f32.mrf.mxu0
        %v489 = vadd.f32 %v424, %v488
        %490 = vmatmul.f32.gmra.mxu0 %v298
        %v491 = vpop.f32.mrf.mxu0
        %v492 = vadd.f32 %v427, %v491
        %493 = vmatmul.f32.gmra.mxu0 %v300
        %v494 = vpop.f32.mrf.mxu0
        %v495 = vadd.f32 %v430, %v494
        %496 = vmatmul.f32.gmra.mxu0 %v302
        %v497 = vpop.f32.mrf.mxu0
        %v498 = vadd.f32 %v433, %v497
        %499 = vmatmul.f32.gmra.mxu0 %v304
        %v500 = vpop.f32.mrf.mxu0
        %v501 = vadd.f32 %v436, %v500
        %502 = vmatmul.f32.gmra.mxu0 %v306
        %v503 = vpop.f32.mrf.mxu0
        %v504 = vadd.f32 %v439, %v503
        %505 = vmatmul.f32.gmra.mxu0 %v308
        %v506 = vpop.f32.mrf.mxu0
        %v507 = vadd.f32 %v442, %v506
        %508 = vdwg.mxu0
        %509 = vmatpush.msra.mxu0 %v340
        %510 = vmatpush.msra.mxu0 %v338
        %511 = vmatpush.msra.mxu0 %v336
        %512 = vmatpush.msra.mxu0 %v334
        %513 = vmatpush.msra.mxu0 %v332
        %514 = vmatpush.msra.mxu0 %v330
        %515 = vmatpush.msra.mxu0 %v328
        %516 = vmatpush.msra.mxu0 %v326
        %517 = vmatpush.msra.mxu0 %v324
        %518 = vmatpush.msra.mxu0 %v322
        %519 = vmatpush.msra.mxu0 %v320
        %520 = vmatpush.msra.mxu0 %v318
        %521 = vmatpush.msra.mxu0 %v316
        %522 = vmatpush.msra.mxu0 %v314
        %523 = vmatpush.msra.mxu0 %v312
        %524 = vmatpush.msra.mxu0 %v310
        %525 = vmatmul.f32.gmra.mxu0 %v277
        %v526 = vpop.f32.mrf.mxu0
        %v527 = vadd.f32 %v376, %v526
        %528 = vmatmul.f32.gmra.mxu0 %v279
        %v529 = vpop.f32.mrf.mxu0
        %v530 = vadd.f32 %v376, %v529
        %531 = vmatmul.f32.gmra.mxu0 %v281
        %v532 = vpop.f32.mrf.mxu0
        %v533 = vadd.f32 %v376, %v532
        %534 = vmatmul.f32.gmra.mxu0 %v283
        %v535 = vpop.f32.mrf.mxu0
        %v536 = vadd.f32 %v376, %v535
        %537 = vmatmul.f32.gmra.mxu0 %v285
        %v538 = vpop.f32.mrf.mxu0
        %v539 = vadd.f32 %v376, %v538
        %540 = vmatmul.f32.gmra.mxu0 %v287
        %v541 = vpop.f32.mrf.mxu0
        %v542 = vadd.f32 %v376, %v541
        %543 = vmatmul.f32.gmra.mxu0 %v289
        %v544 = vpop.f32.mrf.mxu0
        %v545 = vadd.f32 %v376, %v544
        %546 = vmatmul.f32.gmra.mxu0 %v291
        %v547 = vpop.f32.mrf.mxu0
        %v548 = vadd.f32 %v376, %v547
        %549 = vmatmul.f32.gmra.mxu0 %v293
        %v550 = vpop.f32.mrf.mxu0
        %v551 = vadd.f32 %v376, %v550
        %552 = vmatmul.f32.gmra.mxu0 %v295
        %v553 = vpop.f32.mrf.mxu0
        %v554 = vadd.f32 %v376, %v553
        %555 = vmatmul.f32.gmra.mxu0 %v297
        %v556 = vpop.f32.mrf.mxu0
        %v557 = vadd.f32 %v376, %v556
        %558 = vmatmul.f32.gmra.mxu0 %v299
        %v559 = vpop.f32.mrf.mxu0
        %v560 = vadd.f32 %v376, %v559
        %561 = vmatmul.f32.gmra.mxu0 %v301
        %v562 = vpop.f32.mrf.mxu0
        %v563 = vadd.f32 %v376, %v562
        %564 = vmatmul.f32.gmra.mxu0 %v303
        %v565 = vpop.f32.mrf.mxu0
        %v566 = vadd.f32 %v376, %v565
        %567 = vmatmul.f32.gmra.mxu0 %v305
        %v568 = vpop.f32.mrf.mxu0
        %v569 = vadd.f32 %v376, %v568
        %570 = vmatmul.f32.gmra.mxu0 %v307
        %v571 = vpop.f32.mrf.mxu0
        %v572 = vadd.f32 %v376, %v571
        %573 = vdwg.mxu0
        %574 = vmatpush.msra.mxu0 %v372
        %575 = vmatpush.msra.mxu0 %v370
        %576 = vmatpush.msra.mxu0 %v368
        %577 = vmatpush.msra.mxu0 %v366
        %578 = vmatpush.msra.mxu0 %v364
        %579 = vmatpush.msra.mxu0 %v362
        %580 = vmatpush.msra.mxu0 %v360
        %581 = vmatpush.msra.mxu0 %v358
        %582 = vmatpush.msra.mxu0 %v356
        %583 = vmatpush.msra.mxu0 %v354
        %584 = vmatpush.msra.mxu0 %v352
        %585 = vmatpush.msra.mxu0 %v350
        %586 = vmatpush.msra.mxu0 %v348
        %587 = vmatpush.msra.mxu0 %v346
        %588 = vmatpush.msra.mxu0 %v344
        %589 = vmatpush.msra.mxu0 %v342
        %590 = vmatmul.f32.gmra.mxu0 %v278
        %v591 = vpop.f32.mrf.mxu0
        %v592 = vadd.f32 %v527, %v591
        %593 = vmatmul.f32.gmra.mxu0 %v280
        %v594 = vpop.f32.mrf.mxu0
        %v595 = vadd.f32 %v530, %v594
        %596 = vmatmul.f32.gmra.mxu0 %v282
        %v597 = vpop.f32.mrf.mxu0
        %v598 = vadd.f32 %v533, %v597
        %599 = vmatmul.f32.gmra.mxu0 %v284
        %v600 = vpop.f32.mrf.mxu0
        %v601 = vadd.f32 %v536, %v600
        %602 = vmatmul.f32.gmra.mxu0 %v286
        %v603 = vpop.f32.mrf.mxu0
        %v604 = vadd.f32 %v539, %v603
        %605 = vmatmul.f32.gmra.mxu0 %v288
        %v606 = vpop.f32.mrf.mxu0
        %v607 = vadd.f32 %v542, %v606
        %608 = vmatmul.f32.gmra.mxu0 %v290
        %v609 = vpop.f32.mrf.mxu0
        %v610 = vadd.f32 %v545, %v609
        %611 = vmatmul.f32.gmra.mxu0 %v292
        %v612 = vpop.f32.mrf.mxu0
        %v613 = vadd.f32 %v548, %v612
        %614 = vmatmul.f32.gmra.mxu0 %v294
        %v615 = vpop.f32.mrf.mxu0
        %v616 = vadd.f32 %v551, %v615
        %617 = vmatmul.f32.gmra.mxu0 %v296
        %v618 = vpop.f32.mrf.mxu0
        %v619 = vadd.f32 %v554, %v618
        %620 = vmatmul.f32.gmra.mxu0 %v298
        %v621 = vpop.f32.mrf.mxu0
        %v622 = vadd.f32 %v557, %v621
        %623 = vmatmul.f32.gmra.mxu0 %v300
        %v624 = vpop.f32.mrf.mxu0
        %v625 = vadd.f32 %v560, %v624
        %626 = vmatmul.f32.gmra.mxu0 %v302
        %v627 = vpop.f32.mrf.mxu0
        %v628 = vadd.f32 %v563, %v627
        %629 = vmatmul.f32.gmra.mxu0 %v304
        %v630 = vpop.f32.mrf.mxu0
        %v631 = vadd.f32 %v566, %v630
        %632 = vmatmul.f32.gmra.mxu0 %v306
        %v633 = vpop.f32.mrf.mxu0
        %v634 = vadd.f32 %v569, %v633
        %635 = vmatmul.f32.gmra.mxu0 %v308
        %v636 = vpop.f32.mrf.mxu0
        %v637 = vadd.f32 %v572, %v636
        %638 = vdwg.mxu0
        %v639 = vtanh.pop %v462
        %v640 = vtanh.pop %v592
        %v641 = vtanh.pop %v465
        %v642 = vtanh.pop %v595
        %v643 = vtanh.pop %v468
        %v644 = vtanh.pop %v598
        %v645 = vtanh.pop %v471
        %v646 = vtanh.pop %v601
        %v647 = vtanh.pop %v474
        %v648 = vtanh.pop %v604
        %v649 = vtanh.pop %v477
        %v650 = vtanh.pop %v607
        %v651 = vtanh.pop %v480
        %v652 = vtanh.pop %v610
        %v653 = vtanh.pop %v483
        %v654 = vtanh.pop %v613
        %v655 = vtanh.pop %v486
        %v656 = vtanh.pop %v616
        %v657 = vtanh.pop %v489
        %v658 = vtanh.pop %v619
        %v659 = vtanh.pop %v492
        %v660 = vtanh.pop %v622
        %v661 = vtanh.pop %v495
        %v662 = vtanh.pop %v625
        %v663 = vtanh.pop %v498
        %v664 = vtanh.pop %v628
        %v665 = vtanh.pop %v501
        %v666 = vtanh.pop %v631
        %v667 = vtanh.pop %v504
        %v668 = vtanh.pop %v634
        %v669 = vtanh.pop %v507
        %v670 = vtanh.pop %v637
        %v671 = vld [vmem:[%s3] sm:$0x3]
        %v673 = vperm.slane %v671, 0
        %v674 = vperm.slane %v671, 1
        %v677 = vmul.f32 %v639, %v673
        %v678 = vmul.f32 %v640, %v674
        %v679 = vmul.f32 %v641, %v673
        %v680 = vmul.f32 %v642, %v674
        %v681 = vmul.f32 %v643, %v673
        %v682 = vmul.f32 %v644, %v674
        %v683 = vmul.f32 %v645, %v673
        %v684 = vmul.f32 %v646, %v674
        %v685 = vmul.f32 %v647, %v673
        %v686 = vmul.f32 %v648, %v674
        %v687 = vmul.f32 %v649, %v673
        %v688 = vmul.f32 %v650, %v674
        %v689 = vmul.f32 %v651, %v673
        %v690 = vmul.f32 %v652, %v674
        %v691 = vmul.f32 %v653, %v673
        %v692 = vmul.f32 %v654, %v674
        %v693 = vmul.f32 %v655, %v673
        %v694 = vmul.f32 %v656, %v674
        %v695 = vmul.f32 %v657, %v673
        %v696 = vmul.f32 %v658, %v674
        %v697 = vmul.f32 %v659, %v673
        %v698 = vmul.f32 %v660, %v674
        %v699 = vmul.f32 %v661, %v673
        %v700 = vmul.f32 %v662, %v674
        %v701 = vmul.f32 %v663, %v673
        %v702 = vmul.f32 %v664, %v674
        %v703 = vmul.f32 %v665, %v673
        %v704 = vmul.f32 %v666, %v674
        %v705 = vmul.f32 %v667, %v673
        %v706 = vmul.f32 %v668, %v674
        %v707 = vmul.f32 %v669, %v673
        %v708 = vmul.f32 %v670, %v674
        %v709 = vadd.f32 %v677, %v678
        %710 = vadd.xlane.f32.xlu0 %v709
        %v711 = vpop.xlane.xlu0 %710
        %v712 = vadd.f32 %v679, %v680
        %713 = vadd.xlane.f32.xlu0 %v712
        %v714 = vpop.xlane.xlu0 %713
        %v715 = vadd.f32 %v681, %v682
        %716 = vadd.xlane.f32.xlu0 %v715
        %v717 = vpop.xlane.xlu0 %716
        %v718 = vadd.f32 %v683, %v684
        %719 = vadd.xlane.f32.xlu0 %v718
        %v720 = vpop.xlane.xlu0 %719
        %v721 = vadd.f32 %v685, %v686
        %722 = vadd.xlane.f32.xlu0 %v721
        %v723 = vpop.xlane.xlu0 %722
        %v724 = vadd.f32 %v687, %v688
        %725 = vadd.xlane.f32.xlu0 %v724
        %v726 = vpop.xlane.xlu0 %725
        %v727 = vadd.f32 %v689, %v690
        %728 = vadd.xlane.f32.xlu0 %v727
        %v729 = vpop.xlane.xlu0 %728
        %v730 = vadd.f32 %v691, %v692
        %731 = vadd.xlane.f32.xlu0 %v730
        %v732 = vpop.xlane.xlu0 %731
        %v733 = vadd.f32 %v693, %v694
        %734 = vadd.xlane.f32.xlu0 %v733
        %v735 = vpop.xlane.xlu0 %734
        %v736 = vadd.f32 %v695, %v696
        %737 = vadd.xlane.f32.xlu0 %v736
        %v738 = vpop.xlane.xlu0 %737
        %v739 = vadd.f32 %v697, %v698
        %740 = vadd.xlane.f32.xlu0 %v739
        %v741 = vpop.xlane.xlu0 %740
        %v742 = vadd.f32 %v699, %v700
        %743 = vadd.xlane.f32.xlu0 %v742
        %v744 = vpop.xlane.xlu0 %743
        %v745 = vadd.f32 %v701, %v702
        %746 = vadd.xlane.f32.xlu0 %v745
        %v747 = vpop.xlane.xlu0 %746
        %v748 = vadd.f32 %v703, %v704
        %749 = vadd.xlane.f32.xlu0 %v748
        %v750 = vpop.xlane.xlu0 %749
        %v751 = vadd.f32 %v705, %v706
        %752 = vadd.xlane.f32.xlu0 %v751
        %v753 = vpop.xlane.xlu0 %752
        %v754 = vadd.f32 %v707, %v708
        %755 = vadd.xlane.f32.xlu0 %v754
        %v756 = vpop.xlane.xlu0 %755
        %s757 = sld [smem:[#allocation2]]
        %v758 = vstv %s757
        %v759 = vadd.f32 %v711, %v758
        %v760 = vadd.f32 %v714, %v758
        %v761 = vadd.f32 %v717, %v758
        %v762 = vadd.f32 %v720, %v758
        %v763 = vadd.f32 %v723, %v758
        %v764 = vadd.f32 %v726, %v758
        %v765 = vadd.f32 %v729, %v758
        %v766 = vadd.f32 %v732, %v758
        %v767 = vadd.f32 %v735, %v758
        %v768 = vadd.f32 %v738, %v758
        %v769 = vadd.f32 %v741, %v758
        %v770 = vadd.f32 %v744, %v758
        %v771 = vadd.f32 %v747, %v758
        %v772 = vadd.f32 %v750, %v758
        %v773 = vadd.f32 %v753, %v758
        %v774 = vadd.f32 %v756, %v758
        %v791 = vlaneseq
        %v792 = vand.u32 %v791, 127
        %v793 = vperm.slane %v759, %v792
        %v794 = vadd.s32 %v792, 4294967288
        %v795 = vperm.slane %v760, %v794
        %vm796 = vcmask 130112
        %v797 = vsel %vm796, %v795, %v793
        %v798 = vadd.s32 %v792, 4294967280
        %v799 = vperm.slane %v761, %v798
        %vm800 = vcmask 195712
        %v801 = vsel %vm800, %v799, %v797
        %v802 = vadd.s32 %v792, 4294967272
        %v803 = vperm.slane %v762, %v802
        %vm804 = vcmask 261312
        %v805 = vsel %vm804, %v803, %v801
        %v806 = vadd.s32 %v792, 4294967264
        %v807 = vperm.slane %v763, %v806
        %vm808 = vcmask 326912
        %v809 = vsel %vm808, %v807, %v805
        %v810 = vadd.s32 %v792, 4294967256
        %v811 = vperm.slane %v764, %v810
        %vm812 = vcmask 392512
        %v813 = vsel %vm812, %v811, %v809
        %v814 = vadd.s32 %v792, 4294967248
        %v815 = vperm.slane %v765, %v814
        %vm816 = vcmask 458112
        %v817 = vsel %vm816, %v815, %v813
        %v818 = vadd.s32 %v792, 4294967240
        %v819 = vperm.slane %v766, %v818
        %vm820 = vcmask 523712
        %v821 = vsel %vm820, %v819, %v817
        %v822 = vadd.s32 %v792, 4294967232
        %v823 = vperm.slane %v767, %v822
        %vm824 = vcmask 589312
        %v825 = vsel %vm824, %v823, %v821
        %v826 = vadd.s32 %v792, 4294967224
        %v827 = vperm.slane %v768, %v826
        %vm828 = vcmask 654912
        %v829 = vsel %vm828, %v827, %v825
        %v830 = vadd.s32 %v792, 4294967216
        %v831 = vperm.slane %v769, %v830
        %vm832 = vcmask 720512
        %v833 = vsel %vm832, %v831, %v829
        %v834 = vadd.s32 %v792, 4294967208
        %v835 = vperm.slane %v770, %v834
        %vm836 = vcmask 786112
        %v837 = vsel %vm836, %v835, %v833
        %v838 = vadd.s32 %v792, 4294967200
        %v839 = vperm.slane %v771, %v838
        %vm840 = vcmask 851712
        %v841 = vsel %vm840, %v839, %v837
        %v842 = vadd.s32 %v792, 4294967192
        %v843 = vperm.slane %v772, %v842
        %vm844 = vcmask 917312
        %v845 = vsel %vm844, %v843, %v841
        %v846 = vadd.s32 %v792, 4294967184
        %v847 = vperm.slane %v773, %v846
        %vm848 = vcmask 982912
        %v849 = vsel %vm848, %v847, %v845
        %v850 = vadd.s32 %v792, 4294967176
        %v851 = vperm.slane %v774, %v850
        %vm852 = vcmask 1048512
        %v853 = vsel %vm852, %v851, %v849
        %855 = vst [vmem:[%s270] sm:$0x1] %v853
        %s856 = sand.u32 %s142, 1
        %s857 = scalar_lea.sflag [#allocation5], %s856
        %s858 = sand.u32 %s142, 1
        %s859 = scalar_lea.vmem [#allocation8], %s858
        // Predicated region
        $region49: #{tpu_custom_call.1} parent=39 // pred_check
          %p860 = pneg %p152
        $region50: #{tpu_custom_call.1} parent=39 // pred_check_branch
          %862 = sbr.rel (%p860) target = $region52
        $region51: #{tpu_custom_call.1} parent=39 // pred_region
          %864 = vsyncadd %s857, 0
          %s865 = scalar_lea.hbm %s5, %s24
          %s867 = sshll.u32 %s859, 4
          %s868 = int_to_ptr.vmem [resolvable:$true] %s867
          %s869 = sshll.u32 %s865, 4
          %s870 = int_to_ptr.hbm [resolvable:$true] %s869
          %872 = dma.vmem_to_hbm [thread:$0]  %s868, 16, %s870, %s857
        $region52: #{tpu_custom_call.1} parent=39 // pred_fallthru
          _
      $region40: #{tpu_custom_call.1} parent=5 // pred_fallthru
        _
      %p873 = scmp.le.s32.totalorder 2, %s19
      // Predicated region
      $region53: #{tpu_custom_call.1} parent=5 // pred_check
        %p874 = pneg %p873
      $region54: #{tpu_custom_call.1} parent=5 // pred_check_branch
        %876 = sbr.rel (%p874) target = $region56
      $region55: #{tpu_custom_call.1} parent=5 // pred_region
        %s877 = ssub.s32 %s19, 2
        // Predicated region
        $region57: #{tpu_custom_call.1} parent=55 // pred_check
          %p878 = pneg %p158
        $region58: #{tpu_custom_call.1} parent=55 // pred_check_branch
          %880 = sbr.rel (%p878) target = $region60
        $region59: #{tpu_custom_call.1} parent=55 // pred_region
          %s881 = sand.u32 %s143, 1
          %s882 = scalar_lea.sflag [#allocation5], %s881
          %s883 = sand.u32 %s143, 1
          %s884 = scalar_lea.vmem [#allocation8], %s883
          %886 = dma.done %s882, 16
        $region60: #{tpu_custom_call.1} parent=55 // pred_fallthru
          _
      $region56: #{tpu_custom_call.1} parent=5 // pred_fallthru
        _
    $region6: #{tpu_custom_call.1} parent=1 // loop_footer
      %s23 = sadd.s32 1, %s19
    $region7: #{tpu_custom_call.1} parent=1 // loop_footer_branch
      %18 = sbr.rel target = $region3
    $region8: #{tpu_custom_call.1} parent=1 // loop_exit
      _
    %887 = vsyncpa [#allocation4], 1
    %s888 = scalar_lea.sflag [#allocation4], 1
    %889 = vsyncpa %s888, 1
    %890 = vsyncpa [#allocation7], 1
    %891 = vsyncpa [#allocation5], 1
    %s892 = scalar_lea.sflag [#allocation5], 1
    %893 = vsyncpa %s892, 1

</llo_original>
